<compile_context>
chip_gen: v5e
topology: v5e:2x2
jax: 0.10.0
libtpu: 0.0.40
codegen_flags: <defaults>
</compile_context>

<pallas_src>
import functools

import jax
import jax.numpy as jnp
from jax.experimental import pallas as pl
from jax.experimental.pallas import tpu as pltpu

LATENT = 16


# ----------------------------- Pallas kernels ------------------------------

def _mm_bias_act_kernel(a_ref, b_ref, bias_ref, o_ref, *, act):
    # Fused (TM,K)@(K,N) + bias + activation on one M-tile.
    acc = jnp.dot(a_ref[...], b_ref[...], preferred_element_type=jnp.float32)
    acc = acc + bias_ref[...]
    if act == "relu":
        acc = jnp.maximum(acc, 0.0)
    elif act == "sigmoid":
        acc = jax.nn.sigmoid(acc)
    o_ref[...] = acc.astype(o_ref.dtype)


def matmul_bias_act(a, b, bias, act="none", out_dtype=jnp.float32, tm_cap=512):
    """Tiled-over-M matmul + bias + activation. a:(M,K) b:(K,N) bias:(N,)."""
    M, K = a.shape
    K2, N = b.shape
    assert K == K2
    bias2d = bias.reshape(1, N).astype(jnp.float32)

    # Full-array block if small, otherwise 512-row tiles (multiple of 8).
    tm = M if M <= tm_cap else tm_cap
    grid = (pl.cdiv(M, tm),)

    flops = 2 * M * K * N
    bytes_accessed = (M * K * a.dtype.itemsize
                      + K * N * b.dtype.itemsize
                      + N * 4
                      + M * N * jnp.dtype(out_dtype).itemsize)

    return pl.pallas_call(
        functools.partial(_mm_bias_act_kernel, act=act),
        out_shape=jax.ShapeDtypeStruct((M, N), out_dtype),
        grid=grid,
        in_specs=[
            pl.BlockSpec((tm, K), lambda i: (i, 0)),
            pl.BlockSpec((K, N), lambda i: (0, 0)),
            pl.BlockSpec((1, N), lambda i: (0, 0)),
        ],
        out_specs=pl.BlockSpec((tm, N), lambda i: (i, 0)),
        compiler_params=pltpu.CompilerParams(
            dimension_semantics=("parallel",)),
        cost_estimate=pl.CostEstimate(
            flops=flops, transcendentals=0, bytes_accessed=bytes_accessed),
    )(a, b, bias2d)


def _tail_kernel(flat_ref, fcw_ref, fcb_ref, hw_ref, hb_ref, dw_ref, db_ref,
                 eps_ref, recon_ref, mu_ref, lv_ref):
    # Linear(1568,128)+ReLU  (bf16 operands, f32 accumulate)
    feat = jnp.dot(flat_ref[...], fcw_ref[...],
                   preferred_element_type=jnp.float32)
    feat = jnp.maximum(feat + fcb_ref[...], 0.0)

    # fc_mu & fc_logvar as one (128, 32) matmul, f32 for precision.
    heads = jnp.dot(feat, hw_ref[...],
                    preferred_element_type=jnp.float32) + hb_ref[...]
    mu = heads[:, :LATENT]
    logvar = heads[:, LATENT:]

    # reparameterize: z = mu + eps * exp(0.5*logvar)   (f32 throughout)
    z = mu + eps_ref[...] * jnp.exp(0.5 * logvar)

    # decoder: Linear(LATENT, 784) + Sigmoid
    recon = jnp.dot(z, dw_ref[...],
                    preferred_element_type=jnp.float32) + db_ref[...]
    recon_ref[...] = jax.nn.sigmoid(recon)
    mu_ref[...] = mu
    lv_ref[...] = logvar


def vae_tail(flat, fc_w, fc_b, heads_w, heads_b, dec_w, dec_b, eps, tm_cap=256):
    """Fused fc -> heads -> reparameterize -> decoder. flat:(N,1568) bf16."""
    M, K = flat.shape
    D_OUT = dec_w.shape[1]

    tm = M if M <= tm_cap else tm_cap
    grid = (pl.cdiv(M, tm),)

    row = lambda i: (i, 0)
    full = lambda i: (0, 0)

    return pl.pallas_call(
        _tail_kernel,
        out_shape=(
            jax.ShapeDtypeStruct((M, D_OUT), jnp.float32),
            jax.ShapeDtypeStruct((M, LATENT), jnp.float32),
            jax.ShapeDtypeStruct((M, LATENT), jnp.float32),
        ),
        grid=grid,
        in_specs=[
            pl.BlockSpec((tm, K), row),                 # flat
            pl.BlockSpec((K, 128), full),               # fc_w
            pl.BlockSpec((1, 128), full),               # fc_b
            pl.BlockSpec((128, 2 * LATENT), full),      # heads_w (mu|logvar)
            pl.BlockSpec((1, 2 * LATENT), full),        # heads_b
            pl.BlockSpec((LATENT, D_OUT), full),        # dec_w
            pl.BlockSpec((1, D_OUT), full),             # dec_b
            pl.BlockSpec((tm, LATENT), row),            # eps
        ],
        out_specs=(
            pl.BlockSpec((tm, D_OUT), row),
            pl.BlockSpec((tm, LATENT), row),
            pl.BlockSpec((tm, LATENT), row),
        ),
        compiler_params=pltpu.CompilerParams(
            dimension_semantics=("parallel",)),
    )(flat, fc_w, fc_b, heads_w, heads_b, dec_w, dec_b, eps)


# ------------------------------ JAX-side glue -------------------------------

def im2col(x_nhwc, k, s, p):
    """Extract conv patches. Returns (N*Ho*Wo, k*k*C) with (kh, kw, C) minor order."""
    N, H, W, C = x_nhwc.shape
    xp = jnp.pad(x_nhwc, ((0, 0), (p, p), (p, p), (0, 0)))
    Ho = (H + 2 * p - k) // s + 1
    Wo = (W + 2 * p - k) // s + 1
    cols = []
    for i in range(k):
        for j in range(k):
            cols.append(xp[:, i:i + s * Ho:s, j:j + s * Wo:s, :])
    patches = jnp.stack(cols, axis=3)          # (N, Ho, Wo, k*k, C)
    return patches.reshape(N * Ho * Wo, k * k * C), Ho, Wo


def conv_weight_to_mat(w_oihw):
    """PyTorch (Cout,Cin,kh,kw) -> (kh*kw*Cin, Cout) matching im2col ordering."""
    Cout, Cin, kh, kw = w_oihw.shape
    return jnp.transpose(w_oihw, (2, 3, 1, 0)).reshape(kh * kw * Cin, Cout)


def init_params(key):
    ks = jax.random.split(key, 12)

    def u(k, shape, fan_in):
        bound = 1.0 / jnp.sqrt(jnp.float32(fan_in))
        return jax.random.uniform(k, shape, jnp.float32, -bound, bound)

    p = {}
    p["conv1_w"] = u(ks[0], (16, 1, 3, 3), 9)          # Conv2d(1, 16, 3, s=2, p=1)
    p["conv1_b"] = u(ks[1], (16,), 9)
    p["conv2_w"] = u(ks[2], (32, 16, 3, 3), 144)       # Conv2d(16, 32, 3, s=2, p=1)
    p["conv2_b"] = u(ks[3], (32,), 144)
    p["fc_w"]    = u(ks[4], (128, 32 * 7 * 7), 1568)   # Linear(1568, 128)
    p["fc_b"]    = u(ks[5], (128,), 1568)
    p["mu_w"]    = u(ks[6], (LATENT, 128), 128)        # fc_mu
    p["mu_b"]    = u(ks[7], (LATENT,), 128)
    p["lv_w"]    = u(ks[8], (LATENT, 128), 128)        # fc_logvar
    p["lv_b"]    = u(ks[9], (LATENT,), 128)
    p["dec_w"]   = u(ks[10], (28 * 28, LATENT), LATENT)  # decoder: Linear(latent, 784)+Sigmoid
    p["dec_b"]   = u(ks[11], (28 * 28,), LATENT)
    return p


def prepare_params(params):
    """One-time weight transforms: im2col layout, NCHW-flatten fold, head concat, bf16."""
    prep = {}
    # Conv weights as im2col matmul operands (bf16 MXU path).
    prep["conv1_w"] = conv_weight_to_mat(params["conv1_w"]).astype(jnp.bfloat16)
    prep["conv1_b"] = params["conv1_b"].astype(jnp.float32)
    prep["conv2_w"] = conv_weight_to_mat(params["conv2_w"]).astype(jnp.bfloat16)
    prep["conv2_b"] = params["conv2_b"].astype(jnp.float32)

    # Fold torch's NCHW Flatten ordering (c,h,w) into fc_w so the kernel can
    # consume the NHWC-flattened (h,w,c) activations with no runtime transpose.
    fc_w_chw = params["fc_w"].T.reshape(32, 7, 7, 128)             # (c,h,w,out)
    prep["fc_w"] = jnp.transpose(fc_w_chw, (1, 2, 0, 3)).reshape(
        7 * 7 * 32, 128).astype(jnp.bfloat16)                       # (h,w,c)-major
    prep["fc_b"] = params["fc_b"].reshape(1, 128).astype(jnp.float32)

    # Concatenate mu / logvar heads into a single (128, 32) matmul.
    prep["heads_w"] = jnp.concatenate(
        [params["mu_w"].T, params["lv_w"].T], axis=1).astype(jnp.float32)
    prep["heads_b"] = jnp.concatenate(
        [params["mu_b"], params["lv_b"]]).reshape(1, 2 * LATENT).astype(jnp.float32)

    prep["dec_w"] = params["dec_w"].T.astype(jnp.float32)           # (LATENT, 784)
    prep["dec_b"] = params["dec_b"].reshape(1, 28 * 28).astype(jnp.float32)
    return prep


def mnist_vae_forward(prep, x_nchw, eps):
    N = x_nchw.shape[0]
    x = jnp.transpose(x_nchw, (0, 2, 3, 1)).astype(jnp.bfloat16)   # NCHW -> NHWC

    # encoder: Conv(1->16, s=2, p=1) + ReLU  (im2col + fused matmul kernel)
    a1, H1, W1 = im2col(x, 3, 2, 1)                                # (N*14*14, 9)
    h1 = matmul_bias_act(a1, prep["conv1_w"], prep["conv1_b"],
                         act="relu", out_dtype=jnp.bfloat16)
    h1 = h1.reshape(N, H1, W1, 16)

    # encoder: Conv(16->32, s=2, p=1) + ReLU
    a2, H2, W2 = im2col(h1, 3, 2, 1)                               # (N*7*7, 144)
    h2 = matmul_bias_act(a2, prep["conv2_w"], prep["conv2_b"],
                         act="relu", out_dtype=jnp.bfloat16)

    # NHWC flatten (fc_w already permuted to match torch's NCHW Flatten).
    flat = h2.reshape(N, H2 * W2 * 32)

    # Fused: Linear(1568,128)+ReLU -> fc_mu/fc_logvar -> reparameterize -> decoder+Sigmoid
    recon, mu, logvar = vae_tail(flat, prep["fc_w"], prep["fc_b"],
                                 prep["heads_w"], prep["heads_b"],
                                 prep["dec_w"], prep["dec_b"],
                                 eps.astype(jnp.float32))
    return recon.reshape(N, 1, 28, 28), mu, logvar


if __name__ == "__main__":
    key = jax.random.PRNGKey(0)
    pkey, xkey, ekey = jax.random.split(key, 3)

    params = init_params(pkey)
    prep = prepare_params(params)

    # MNIST-shaped input (28x28 required by Linear(32*7*7, 128)); batch=2.
    x = jax.random.normal(xkey, (2, 1, 28, 28), jnp.float32)
    eps = jax.random.normal(ekey, (2, LATENT), jnp.float32)

    recon, mu, logvar = jax.jit(mnist_vae_forward)(prep, x, eps)
    jax.block_until_ready((recon, mu, logvar))

    assert recon.shape == (2, 1, 28, 28)
    assert mu.shape == (2, LATENT) and logvar.shape == (2, LATENT)
    assert bool(jnp.all(jnp.isfinite(recon)))
    assert bool(jnp.all((recon >= 0.0) & (recon <= 1.0)))
    print("KERNEL_OK")
</pallas_src>

<mosaic_0001>
module attributes {stable_mosaic.version = 11 : i64} {
  func.func @_mm_bias_act_kernel(%arg0: i32, %arg1: memref<392x9xbf16, #tpu.memory_space<vmem>>, %arg2: memref<9x16xbf16, #tpu.memory_space<vmem>>, %arg3: memref<1x16xf32, #tpu.memory_space<vmem>>, %arg4: memref<392x16xbf16, #tpu.memory_space<vmem>>) attributes {dimension_semantics = [#tpu.dimension_semantics<parallel>], iteration_bounds = array<i64: 1>, scalar_prefetch = 0 : i64, scratch_operands = 0 : i64, tpu.core_type = #tpu.core_type<tc>, window_params = [{transform_indices = @transform_0, window_bounds = array<i64: 392, 9>}, {pipeline_mode = #tpu.pipeline_mode<synchronous>, transform_indices = @transform_1, window_bounds = array<i64: 9, 16>}, {pipeline_mode = #tpu.pipeline_mode<synchronous>, transform_indices = @transform_2, window_bounds = array<i64: 1, 16>}, {transform_indices = @transform_3, window_bounds = array<i64: 392, 16>}]} {
    %c0 = arith.constant 0 : index
    %c0_0 = arith.constant 0 : index
    %0 = vector.load %arg1[%c0, %c0_0] : memref<392x9xbf16, #tpu.memory_space<vmem>>, vector<392x9xbf16>
    %c0_1 = arith.constant 0 : index
    %c0_2 = arith.constant 0 : index
    %1 = vector.load %arg2[%c0_1, %c0_2] : memref<9x16xbf16, #tpu.memory_space<vmem>>, vector<9x16xbf16>
    %cst = arith.constant dense<0.000000e+00> : vector<392x16xf32>
    %2 = tpu.matmul %0, %1, %cst {dimension_numbers = #tpu.dot_dimension_numbers<[1], [0], [0], [1], [0, 0, 1, 1], [], []>} : vector<392x9xbf16>, vector<9x16xbf16>, vector<392x16xf32> -> vector<392x16xf32>
    %c0_3 = arith.constant 0 : index
    %c0_4 = arith.constant 0 : index
    %3 = vector.load %arg3[%c0_3, %c0_4] : memref<1x16xf32, #tpu.memory_space<vmem>>, vector<1x16xf32>
    %4 = vector.broadcast %3 : vector<1x16xf32> to vector<392x16xf32>
    %5 = arith.addf %2, %4 : vector<392x16xf32>
    %cst_5 = arith.constant 0.000000e+00 : f32
    %6 = vector.broadcast %cst_5 : f32 to vector<392x16xf32>
    %7 = arith.maximumf %5, %6 : vector<392x16xf32>
    %8 = arith.truncf %7 : vector<392x16xf32> to vector<392x16xbf16>
    %c0_6 = arith.constant 0 : index
    %c0_7 = arith.constant 0 : index
    %9 = vector.load %arg4[%c0_6, %c0_7] : memref<392x16xbf16, #tpu.memory_space<vmem>>, vector<392x16xbf16>
    tpu.vector_store %arg4[%c0_6, %c0_7], %8 {strides = array<i32>} : memref<392x16xbf16, #tpu.memory_space<vmem>>, vector<392x16xbf16>,
    return
  }
  func.func @transform_0(%arg0: i32) -> (i32, i32) {
    %c0_i32 = arith.constant 0 : i32
    %c0_i32_0 = arith.constant 0 : i32
    return %arg0, %c0_i32 : i32, i32
  }
  func.func @transform_1(%arg0: i32) -> (i32, i32) {
    %c0_i32 = arith.constant 0 : i32
    %c0_i32_0 = arith.constant 0 : i32
    %c0_i32_1 = arith.constant 0 : i32
    return %c0_i32, %c0_i32_0 : i32, i32
  }
  func.func @transform_2(%arg0: i32) -> (i32, i32) {
    %c0_i32 = arith.constant 0 : i32
    %c0_i32_0 = arith.constant 0 : i32
    %c0_i32_1 = arith.constant 0 : i32
    return %c0_i32, %c0_i32_0 : i32, i32
  }
  func.func @transform_3(%arg0: i32) -> (i32, i32) {
    %c0_i32 = arith.constant 0 : i32
    %c0_i32_0 = arith.constant 0 : i32
    return %arg0, %c0_i32 : i32, i32
  }
}

module attributes {stable_mosaic.version = 11 : i64} {
  func.func @_mm_bias_act_kernel(%arg0: i32, %arg1: memref<98x144xbf16, #tpu.memory_space<vmem>>, %arg2: memref<144x32xbf16, #tpu.memory_space<vmem>>, %arg3: memref<1x32xf32, #tpu.memory_space<vmem>>, %arg4: memref<98x32xbf16, #tpu.memory_space<vmem>>) attributes {dimension_semantics = [#tpu.dimension_semantics<parallel>], iteration_bounds = array<i64: 1>, scalar_prefetch = 0 : i64, scratch_operands = 0 : i64, tpu.core_type = #tpu.core_type<tc>, window_params = [{transform_indices = @transform_0, window_bounds = array<i64: 98, 144>}, {pipeline_mode = #tpu.pipeline_mode<synchronous>, transform_indices = @transform_1, window_bounds = array<i64: 144, 32>}, {pipeline_mode = #tpu.pipeline_mode<synchronous>, transform_indices = @transform_2, window_bounds = array<i64: 1, 32>}, {transform_indices = @transform_3, window_bounds = array<i64: 98, 32>}]} {
    %c0 = arith.constant 0 : index
    %c0_0 = arith.constant 0 : index
    %0 = vector.load %arg1[%c0, %c0_0] : memref<98x144xbf16, #tpu.memory_space<vmem>>, vector<98x144xbf16>
    %c0_1 = arith.constant 0 : index
    %c0_2 = arith.constant 0 : index
    %1 = vector.load %arg2[%c0_1, %c0_2] : memref<144x32xbf16, #tpu.memory_space<vmem>>, vector<144x32xbf16>
    %cst = arith.constant dense<0.000000e+00> : vector<98x32xf32>
    %2 = tpu.matmul %0, %1, %cst {dimension_numbers = #tpu.dot_dimension_numbers<[1], [0], [0], [1], [0, 0, 1, 1], [], []>} : vector<98x144xbf16>, vector<144x32xbf16>, vector<98x32xf32> -> vector<98x32xf32>
    %c0_3 = arith.constant 0 : index
    %c0_4 = arith.constant 0 : index
    %3 = vector.load %arg3[%c0_3, %c0_4] : memref<1x32xf32, #tpu.memory_space<vmem>>, vector<1x32xf32>
    %4 = vector.broadcast %3 : vector<1x32xf32> to vector<98x32xf32>
    %5 = arith.addf %2, %4 : vector<98x32xf32>
    %cst_5 = arith.constant 0.000000e+00 : f32
    %6 = vector.broadcast %cst_5 : f32 to vector<98x32xf32>
    %7 = arith.maximumf %5, %6 : vector<98x32xf32>
    %8 = arith.truncf %7 : vector<98x32xf32> to vector<98x32xbf16>
    %c0_6 = arith.constant 0 : index
    %c0_7 = arith.constant 0 : index
    %9 = vector.load %arg4[%c0_6, %c0_7] : memref<98x32xbf16, #tpu.memory_space<vmem>>, vector<98x32xbf16>
    tpu.vector_store %arg4[%c0_6, %c0_7], %8 {strides = array<i32>} : memref<98x32xbf16, #tpu.memory_space<vmem>>, vector<98x32xbf16>,
    return
  }
  func.func @transform_0(%arg0: i32) -> (i32, i32) {
    %c0_i32 = arith.constant 0 : i32
    %c0_i32_0 = arith.constant 0 : i32
    return %arg0, %c0_i32 : i32, i32
  }
  func.func @transform_1(%arg0: i32) -> (i32, i32) {
    %c0_i32 = arith.constant 0 : i32
    %c0_i32_0 = arith.constant 0 : i32
    %c0_i32_1 = arith.constant 0 : i32
    return %c0_i32, %c0_i32_0 : i32, i32
  }
  func.func @transform_2(%arg0: i32) -> (i32, i32) {
    %c0_i32 = arith.constant 0 : i32
    %c0_i32_0 = arith.constant 0 : i32
    %c0_i32_1 = arith.constant 0 : i32
    return %c0_i32, %c0_i32_0 : i32, i32
  }
  func.func @transform_3(%arg0: i32) -> (i32, i32) {
    %c0_i32 = arith.constant 0 : i32
    %c0_i32_0 = arith.constant 0 : i32
    return %arg0, %c0_i32 : i32, i32
  }
}

module attributes {stable_mosaic.version = 11 : i64} {
  func.func @_tail_kernel(%arg0: i32, %arg1: memref<2x1568xbf16, #tpu.memory_space<vmem>>, %arg2: memref<1568x128xbf16, #tpu.memory_space<vmem>>, %arg3: memref<1x128xf32, #tpu.memory_space<vmem>>, %arg4: memref<128x32xf32, #tpu.memory_space<vmem>>, %arg5: memref<1x32xf32, #tpu.memory_space<vmem>>, %arg6: memref<16x784xf32, #tpu.memory_space<vmem>>, %arg7: memref<1x784xf32, #tpu.memory_space<vmem>>, %arg8: memref<2x16xf32, #tpu.memory_space<vmem>>, %arg9: memref<2x784xf32, #tpu.memory_space<vmem>>, %arg10: memref<2x16xf32, #tpu.memory_space<vmem>>, %arg11: memref<2x16xf32, #tpu.memory_space<vmem>>) attributes {dimension_semantics = [#tpu.dimension_semantics<parallel>], iteration_bounds = array<i64: 1>, scalar_prefetch = 0 : i64, scratch_operands = 0 : i64, tpu.core_type = #tpu.core_type<tc>, window_params = [{transform_indices = @transform_0, window_bounds = array<i64: 2, 1568>}, {pipeline_mode = #tpu.pipeline_mode<synchronous>, transform_indices = @transform_1, window_bounds = array<i64: 1568, 128>}, {pipeline_mode = #tpu.pipeline_mode<synchronous>, transform_indices = @transform_2, window_bounds = array<i64: 1, 128>}, {pipeline_mode = #tpu.pipeline_mode<synchronous>, transform_indices = @transform_3, window_bounds = array<i64: 128, 32>}, {pipeline_mode = #tpu.pipeline_mode<synchronous>, transform_indices = @transform_4, window_bounds = array<i64: 1, 32>}, {pipeline_mode = #tpu.pipeline_mode<synchronous>, transform_indices = @transform_5, window_bounds = array<i64: 16, 784>}, {pipeline_mode = #tpu.pipeline_mode<synchronous>, transform_indices = @transform_6, window_bounds = array<i64: 1, 784>}, {transform_indices = @transform_7, window_bounds = array<i64: 2, 16>}, {transform_indices = @transform_8, window_bounds = array<i64: 2, 784>}, {transform_indices = @transform_9, window_bounds = array<i64: 2, 16>}, {transform_indices = @transform_10, window_bounds = array<i64: 2, 16>}]} {
    %c0 = arith.constant 0 : index
    %c0_0 = arith.constant 0 : index
    %0 = vector.load %arg1[%c0, %c0_0] : memref<2x1568xbf16, #tpu.memory_space<vmem>>, vector<2x1568xbf16>
    %c0_1 = arith.constant 0 : index
    %c0_2 = arith.constant 0 : index
    %1 = vector.load %arg2[%c0_1, %c0_2] : memref<1568x128xbf16, #tpu.memory_space<vmem>>, vector<1568x128xbf16>
    %cst = arith.constant dense<0.000000e+00> : vector<2x128xf32>
    %2 = tpu.matmul %0, %1, %cst {dimension_numbers = #tpu.dot_dimension_numbers<[1], [0], [0], [1], [0, 0, 1, 1], [], []>} : vector<2x1568xbf16>, vector<1568x128xbf16>, vector<2x128xf32> -> vector<2x128xf32>
    %c0_3 = arith.constant 0 : index
    %c0_4 = arith.constant 0 : index
    %3 = vector.load %arg3[%c0_3, %c0_4] : memref<1x128xf32, #tpu.memory_space<vmem>>, vector<1x128xf32>
    %4 = vector.broadcast %3 : vector<1x128xf32> to vector<2x128xf32>
    %5 = arith.addf %2, %4 : vector<2x128xf32>
    %cst_5 = arith.constant 0.000000e+00 : f32
    %6 = vector.broadcast %cst_5 : f32 to vector<2x128xf32>
    %7 = arith.maximumf %5, %6 : vector<2x128xf32>
    %c0_6 = arith.constant 0 : index
    %c0_7 = arith.constant 0 : index
    %8 = vector.load %arg4[%c0_6, %c0_7] : memref<128x32xf32, #tpu.memory_space<vmem>>, vector<128x32xf32>
    %cst_8 = arith.constant dense<0.000000e+00> : vector<2x32xf32>
    %9 = tpu.matmul %7, %8, %cst_8 {dimension_numbers = #tpu.dot_dimension_numbers<[1], [0], [0], [1], [0, 0, 1, 1], [], []>} : vector<2x128xf32>, vector<128x32xf32>, vector<2x32xf32> -> vector<2x32xf32>
    %c0_9 = arith.constant 0 : index
    %c0_10 = arith.constant 0 : index
    %10 = vector.load %arg5[%c0_9, %c0_10] : memref<1x32xf32, #tpu.memory_space<vmem>>, vector<1x32xf32>
    %11 = vector.broadcast %10 : vector<1x32xf32> to vector<2x32xf32>
    %12 = arith.addf %9, %11 : vector<2x32xf32>
    %13 = vector.extract_strided_slice %12 {offsets = [0, 0], sizes = [2, 16], strides = [1, 1]} : vector<2x32xf32> to vector<2x16xf32>
    %14 = vector.extract_strided_slice %12 {offsets = [0, 16], sizes = [2, 16], strides = [1, 1]} : vector<2x32xf32> to vector<2x16xf32>
    %c0_11 = arith.constant 0 : index
    %c0_12 = arith.constant 0 : index
    %15 = vector.load %arg8[%c0_11, %c0_12] : memref<2x16xf32, #tpu.memory_space<vmem>>, vector<2x16xf32>
    %cst_13 = arith.constant 5.000000e-01 : f32
    %16 = vector.broadcast %cst_13 : f32 to vector<2x16xf32>
    %17 = arith.mulf %16, %14 : vector<2x16xf32>
    %18 = math.exp %17 : vector<2x16xf32>
    %19 = arith.mulf %15, %18 : vector<2x16xf32>
    %20 = arith.addf %13, %19 : vector<2x16xf32>
    %c0_14 = arith.constant 0 : index
    %c0_15 = arith.constant 0 : index
    %21 = vector.load %arg6[%c0_14, %c0_15] : memref<16x784xf32, #tpu.memory_space<vmem>>, vector<16x784xf32>
    %cst_16 = arith.constant dense<0.000000e+00> : vector<2x784xf32>
    %22 = tpu.matmul %20, %21, %cst_16 {dimension_numbers = #tpu.dot_dimension_numbers<[1], [0], [0], [1], [0, 0, 1, 1], [], []>} : vector<2x16xf32>, vector<16x784xf32>, vector<2x784xf32> -> vector<2x784xf32>
    %c0_17 = arith.constant 0 : index
    %c0_18 = arith.constant 0 : index
    %23 = vector.load %arg7[%c0_17, %c0_18] : memref<1x784xf32, #tpu.memory_space<vmem>>, vector<1x784xf32>
    %24 = vector.broadcast %23 : vector<1x784xf32> to vector<2x784xf32>
    %25 = arith.addf %22, %24 : vector<2x784xf32>
    %26 = arith.negf %25 : vector<2x784xf32>
    %27 = math.exp %26 : vector<2x784xf32>
    %cst_19 = arith.constant 1.000000e+00 : f32
    %28 = vector.broadcast %cst_19 : f32 to vector<2x784xf32>
    %29 = arith.addf %28, %27 : vector<2x784xf32>
    %30 = arith.divf %28, %29 : vector<2x784xf32>
    %c0_20 = arith.constant 0 : index
    %c0_21 = arith.constant 0 : index
    %31 = vector.load %arg9[%c0_20, %c0_21] : memref<2x784xf32, #tpu.memory_space<vmem>>, vector<2x784xf32>
    tpu.vector_store %arg9[%c0_20, %c0_21], %30 {strides = array<i32>} : memref<2x784xf32, #tpu.memory_space<vmem>>, vector<2x784xf32>,
    %c0_22 = arith.constant 0 : index
    %c0_23 = arith.constant 0 : index
    %32 = vector.load %arg10[%c0_22, %c0_23] : memref<2x16xf32, #tpu.memory_space<vmem>>, vector<2x16xf32>
    tpu.vector_store %arg10[%c0_22, %c0_23], %13 {strides = array<i32>} : memref<2x16xf32, #tpu.memory_space<vmem>>, vector<2x16xf32>,
    %c0_24 = arith.constant 0 : index
    %c0_25 = arith.constant 0 : index
    %33 = vector.load %arg11[%c0_24, %c0_25] : memref<2x16xf32, #tpu.memory_space<vmem>>, vector<2x16xf32>
    tpu.vector_store %arg11[%c0_24, %c0_25], %14 {strides = array<i32>} : memref<2x16xf32, #tpu.memory_space<vmem>>, vector<2x16xf32>,
    return
  }
  func.func @transform_0(%arg0: i32) -> (i32, i32) {
    %c0_i32 = arith.constant 0 : i32
    %c0_i32_0 = arith.constant 0 : i32
    return %arg0, %c0_i32 : i32, i32
  }
  func.func @transform_1(%arg0: i32) -> (i32, i32) {
    %c0_i32 = arith.constant 0 : i32
    %c0_i32_0 = arith.constant 0 : i32
    %c0_i32_1 = arith.constant 0 : i32
    return %c0_i32, %c0_i32_0 : i32, i32
  }
  func.func @transform_2(%arg0: i32) -> (i32, i32) {
    %c0_i32 = arith.constant 0 : i32
    %c0_i32_0 = arith.constant 0 : i32
    %c0_i32_1 = arith.constant 0 : i32
    return %c0_i32, %c0_i32_0 : i32, i32
  }
  func.func @transform_3(%arg0: i32) -> (i32, i32) {
    %c0_i32 = arith.constant 0 : i32
    %c0_i32_0 = arith.constant 0 : i32
    %c0_i32_1 = arith.constant 0 : i32
    return %c0_i32, %c0_i32_0 : i32, i32
  }
  func.func @transform_4(%arg0: i32) -> (i32, i32) {
    %c0_i32 = arith.constant 0 : i32
    %c0_i32_0 = arith.constant 0 : i32
    %c0_i32_1 = arith.constant 0 : i32
    return %c0_i32, %c0_i32_0 : i32, i32
  }
  func.func @transform_5(%arg0: i32) -> (i32, i32) {
    %c0_i32 = arith.constant 0 : i32
    %c0_i32_0 = arith.constant 0 : i32
    %c0_i32_1 = arith.constant 0 : i32
    return %c0_i32, %c0_i32_0 : i32, i32
  }
  func.func @transform_6(%arg0: i32) -> (i32, i32) {
    %c0_i32 = arith.constant 0 : i32
    %c0_i32_0 = arith.constant 0 : i32
    %c0_i32_1 = arith.constant 0 : i32
    return %c0_i32, %c0_i32_0 : i32, i32
  }
  func.func @transform_7(%arg0: i32) -> (i32, i32) {
    %c0_i32 = arith.constant 0 : i32
    %c0_i32_0 = arith.constant 0 : i32
    return %arg0, %c0_i32 : i32, i32
  }
  func.func @transform_8(%arg0: i32) -> (i32, i32) {
    %c0_i32 = arith.constant 0 : i32
    %c0_i32_0 = arith.constant 0 : i32
    return %arg0, %c0_i32 : i32, i32
  }
  func.func @transform_9(%arg0: i32) -> (i32, i32) {
    %c0_i32 = arith.constant 0 : i32
    %c0_i32_0 = arith.constant 0 : i32
    return %arg0, %c0_i32 : i32, i32
  }
  func.func @transform_10(%arg0: i32) -> (i32, i32) {
    %c0_i32 = arith.constant 0 : i32
    %c0_i32_0 = arith.constant 0 : i32
    return %arg0, %c0_i32 : i32, i32
  }
}

</mosaic_0001>

<llo_original>
// kernel: mnist_vae_forward.3
$region0: #{mnist_vae_forward.3}
  #allocation0 [shape = 'u32[]', space=smem, size = 0x4, offset = 0x4, fixed_abs, tag = 'smem constant byte address 0x4 - core index']
  #allocation1 [shape = 'u32[72,128]{1,0:T(1,128)}', space=vmem, size = 0x9000, scoped, tag = 'internal scratch']
  %s0 = inlined_call_operand.vmem [shape: bf16[392,9], index: 0, kind: input, shape index: {}]
  %s1 = inlined_call_operand.vmem [shape: bf16[9,16], index: 1, kind: input, shape index: {}]
  %s2 = inlined_call_operand.vmem [shape: f32[1,16], index: 2, kind: input, shape index: {}]
  %s3 = inlined_call_operand.vmem [shape: bf16[392,16], index: 3, kind: output, shape index: {}]
  %s4 = sld [smem:[#allocation0]]
  $region22: #{mnist_vae_forward.3} parent=0
    _
  %s6 = ssub.s32 1, %s4
  %s7 = scalar_select 0, %s6, %s4
  // Predicated region
  $region2: #{mnist_vae_forward.3} parent=0 // pred_check
    _
  $region3: #{mnist_vae_forward.3} parent=0 // pred_check_branch
    %9 = sbr.rel (0) target = $region5
  $region4: #{mnist_vae_forward.3} parent=0 // pred_region
    _
  $region5: #{mnist_vae_forward.3} parent=0 // pred_fallthru
    _
  // Predicated region
  $region6: #{mnist_vae_forward.3} parent=0 // pred_check
    _
  $region7: #{mnist_vae_forward.3} parent=0 // pred_check_branch
    %11 = sbr.rel (0) target = $region9
  $region8: #{mnist_vae_forward.3} parent=0 // pred_region
    _
  $region9: #{mnist_vae_forward.3} parent=0 // pred_fallthru
    _
  // Predicated region
  $region10: #{mnist_vae_forward.3} parent=0 // pred_check
    _
  $region11: #{mnist_vae_forward.3} parent=0 // pred_check_branch
    %13 = sbr.rel (0) target = $region13
  $region12: #{mnist_vae_forward.3} parent=0 // pred_region
    _
  $region13: #{mnist_vae_forward.3} parent=0 // pred_fallthru
    _
  %v15 = vld [vmem:[%s0] sm:$0xf]
  %v16 = vld [vmem:[%s0 + $0x4] sm:$0xf]
  %v17 = vld [vmem:[%s0 + $0x8] sm:$0xf]
  %v18 = vld [vmem:[%s0 + $0xc] sm:$0xf]
  %v19 = vld [vmem:[%s0 + $0x10] sm:$0xf]
  %v20 = vld [vmem:[%s0 + $0x14] sm:$0xf]
  %v21 = vld [vmem:[%s0 + $0x18] sm:$0xf]
  %v22 = vld [vmem:[%s0 + $0x1c] sm:$0xf]
  %v23 = vld [vmem:[%s0 + $0x20] sm:$0xf]
  %v24 = vld [vmem:[%s0 + $0x24] sm:$0xf]
  %v25 = vld [vmem:[%s0 + $0x28] sm:$0xf]
  %v26 = vld [vmem:[%s0 + $0x2c] sm:$0xf]
  %v27 = vld [vmem:[%s0 + $0x30] sm:$0xf]
  %v28 = vld [vmem:[%s0 + $0x34] sm:$0xf]
  %v29 = vld [vmem:[%s0 + $0x38] sm:$0xf]
  %v30 = vld [vmem:[%s0 + $0x3c] sm:$0xf]
  %v31 = vld [vmem:[%s0 + $0x40] sm:$0xf]
  %v32 = vld [vmem:[%s0 + $0x44] sm:$0xf]
  %v33 = vld [vmem:[%s0 + $0x48] sm:$0xf]
  %v34 = vld [vmem:[%s0 + $0x4c] sm:$0xf]
  %v35 = vld [vmem:[%s0 + $0x50] sm:$0xf]
  %v36 = vld [vmem:[%s0 + $0x54] sm:$0xf]
  %v37 = vld [vmem:[%s0 + $0x58] sm:$0xf]
  %v38 = vld [vmem:[%s0 + $0x5c] sm:$0xf]
  %v39 = vld [vmem:[%s0 + $0x60] sm:$0xf]
  %v40 = vld [vmem:[%s0 + $0x64] sm:$0xf]
  %v41 = vld [vmem:[%s0 + $0x68] sm:$0xf]
  %v42 = vld [vmem:[%s0 + $0x6c] sm:$0xf]
  %v43 = vld [vmem:[%s0 + $0x70] sm:$0xf]
  %v44 = vld [vmem:[%s0 + $0x74] sm:$0xf]
  %v45 = vld [vmem:[%s0 + $0x78] sm:$0xf]
  %v46 = vld [vmem:[%s0 + $0x7c] sm:$0xf]
  %v47 = vld [vmem:[%s0 + $0x80] sm:$0xf]
  %v48 = vld [vmem:[%s0 + $0x84] sm:$0xf]
  %v49 = vld [vmem:[%s0 + $0x88] sm:$0xf]
  %v50 = vld [vmem:[%s0 + $0x8c] sm:$0xf]
  %v51 = vld [vmem:[%s0 + $0x90] sm:$0xf]
  %v52 = vld [vmem:[%s0 + $0x94] sm:$0xf]
  %v53 = vld [vmem:[%s0 + $0x98] sm:$0xf]
  %v54 = vld [vmem:[%s0 + $0x9c] sm:$0xf]
  %v55 = vld [vmem:[%s0 + $0xa0] sm:$0xf]
  %v56 = vld [vmem:[%s0 + $0xa4] sm:$0xf]
  %v57 = vld [vmem:[%s0 + $0xa8] sm:$0xf]
  %v58 = vld [vmem:[%s0 + $0xac] sm:$0xf]
  %v59 = vld [vmem:[%s0 + $0xb0] sm:$0xf]
  %v60 = vld [vmem:[%s0 + $0xb4] sm:$0xf]
  %v61 = vld [vmem:[%s0 + $0xb8] sm:$0xf]
  %v62 = vld [vmem:[%s0 + $0xbc] sm:$0xf]
  %v63 = vld [vmem:[%s0 + $0xc0] sm:$0xf]
  %v64 = vld [vmem:[%s1] sm:$0xf]
  %v65 = vld [vmem:[%s1 + $0x4] sm:$0x1]
  %v66 = vld [vmem:[%s2] sm:$0x1]
  %v68 = vperm.slane %v66, 0
  %v119 = vunpack.c.l.b16 %v15
  %v120 = vunpack.c.l.b16 %v16
  %v121 = vunpack.c.l.b16 %v17
  %v122 = vunpack.c.l.b16 %v18
  %v123 = vunpack.c.l.b16 %v19
  %v124 = vunpack.c.l.b16 %v20
  %v125 = vunpack.c.l.b16 %v21
  %v126 = vunpack.c.l.b16 %v22
  %v127 = vunpack.c.l.b16 %v23
  %v128 = vunpack.c.l.b16 %v24
  %v129 = vunpack.c.l.b16 %v25
  %v130 = vunpack.c.l.b16 %v26
  %v131 = vunpack.c.l.b16 %v27
  %v132 = vunpack.c.l.b16 %v28
  %v133 = vunpack.c.l.b16 %v29
  %v134 = vunpack.c.l.b16 %v30
  %v135 = vunpack.c.l.b16 %v31
  %v136 = vunpack.c.l.b16 %v32
  %v137 = vunpack.c.l.b16 %v33
  %v138 = vunpack.c.l.b16 %v34
  %v139 = vunpack.c.l.b16 %v35
  %v140 = vunpack.c.l.b16 %v36
  %v141 = vunpack.c.l.b16 %v37
  %v142 = vunpack.c.l.b16 %v38
  %v143 = vunpack.c.l.b16 %v39
  %v144 = vunpack.c.l.b16 %v40
  %v145 = vunpack.c.l.b16 %v41
  %v146 = vunpack.c.l.b16 %v42
  %v147 = vunpack.c.l.b16 %v43
  %v148 = vunpack.c.l.b16 %v44
  %v149 = vunpack.c.l.b16 %v45
  %v150 = vunpack.c.l.b16 %v46
  %v151 = vunpack.c.l.b16 %v47
  %v152 = vunpack.c.l.b16 %v48
  %v153 = vunpack.c.l.b16 %v49
  %v154 = vunpack.c.l.b16 %v50
  %v155 = vunpack.c.l.b16 %v51
  %v156 = vunpack.c.l.b16 %v52
  %v157 = vunpack.c.l.b16 %v53
  %v158 = vunpack.c.l.b16 %v54
  %v159 = vunpack.c.l.b16 %v55
  %v160 = vunpack.c.l.b16 %v56
  %v161 = vunpack.c.l.b16 %v57
  %v162 = vunpack.c.l.b16 %v58
  %v163 = vunpack.c.l.b16 %v59
  %v164 = vunpack.c.l.b16 %v60
  %v165 = vunpack.c.l.b16 %v61
  %v166 = vunpack.c.l.b16 %v62
  %v167 = vunpack.c.l.b16 %v63
  %v168 = vpack.c.b16 %v120, %v119
  %v169 = vpack.c.b16 %v122, %v121
  %v170 = vpack.c.b16 %v124, %v123
  %v171 = vpack.c.b16 %v126, %v125
  %v172 = vpack.c.b16 %v128, %v127
  %v173 = vpack.c.b16 %v130, %v129
  %v174 = vpack.c.b16 %v132, %v131
  %v175 = vpack.c.b16 %v134, %v133
  %v176 = vpack.c.b16 %v136, %v135
  %v177 = vpack.c.b16 %v138, %v137
  %v178 = vpack.c.b16 %v140, %v139
  %v179 = vpack.c.b16 %v142, %v141
  %v180 = vpack.c.b16 %v144, %v143
  %v181 = vpack.c.b16 %v146, %v145
  %v182 = vpack.c.b16 %v148, %v147
  %v183 = vpack.c.b16 %v150, %v149
  %v184 = vpack.c.b16 %v152, %v151
  %v185 = vpack.c.b16 %v154, %v153
  %v186 = vpack.c.b16 %v156, %v155
  %v187 = vpack.c.b16 %v158, %v157
  %v188 = vpack.c.b16 %v160, %v159
  %v189 = vpack.c.b16 %v162, %v161
  %v190 = vpack.c.b16 %v164, %v163
  %v191 = vpack.c.b16 %v166, %v165
  %v192 = vpack.c.b16 %v167, %v167
  %v195 = vunpack.c.l.b16 %v64
  %v196 = vunpack.c.l.b16 %v65
  %v197 = vpack.c.b16 %v196, %v195
  %vm198 = vcmask 72704
  %v200 = vsel %vm198, %v168, 0
  %v203 = vsel %vm198, %v169, 0
  %v206 = vsel %vm198, %v170, 0
  %v209 = vsel %vm198, %v171, 0
  %v212 = vsel %vm198, %v172, 0
  %v215 = vsel %vm198, %v173, 0
  %v218 = vsel %vm198, %v174, 0
  %v221 = vsel %vm198, %v175, 0
  %v224 = vsel %vm198, %v176, 0
  %v227 = vsel %vm198, %v177, 0
  %v230 = vsel %vm198, %v178, 0
  %v233 = vsel %vm198, %v179, 0
  %v236 = vsel %vm198, %v180, 0
  %v239 = vsel %vm198, %v181, 0
  %v242 = vsel %vm198, %v182, 0
  %v245 = vsel %vm198, %v183, 0
  %v248 = vsel %vm198, %v184, 0
  %v251 = vsel %vm198, %v185, 0
  %v254 = vsel %vm198, %v186, 0
  %v257 = vsel %vm198, %v187, 0
  %v260 = vsel %vm198, %v188, 0
  %v263 = vsel %vm198, %v189, 0
  %v266 = vsel %vm198, %v190, 0
  %v269 = vsel %vm198, %v191, 0
  %v272 = vsel %vm198, %v192, 0
  %vm274 = vcmask 1043456
  %vm275 = vcmask 1044480
  %v276 = vsel %vm274, 4294967295, 65535
  %v277 = vsel %vm275, %v276, 0
  %v279 = vand.u32 %v197, %v277
  %281 = vmatpush.bf16.msra.mxu0 0
  %282 = vmatpush.bf16.msra.mxu0 0
  %283 = vmatpush.bf16.msra.mxu0 0
  %284 = vmatpush.bf16.msra.mxu0 0
  %285 = vmatpush.bf16.msra.mxu0 0
  %286 = vmatpush.bf16.msra.mxu0 0
  %287 = vmatpush.bf16.msra.mxu0 0
  %288 = vmatpush.bf16.msra.mxu0 %v279
  %289 = vmatmul.bf16.gmra.mxu0 %v200
  %v290 = vpop.f32.mrf.mxu0
  %v291 = vadd.f32 %v68, %v290
  %v292 = vpop.f32.mrf.mxu0
  %v293 = vadd.f32 %v68, %v292
  %294 = vmatmul.bf16.gmra.mxu0 %v203
  %v295 = vpop.f32.mrf.mxu0
  %v296 = vadd.f32 %v68, %v295
  %v297 = vpop.f32.mrf.mxu0
  %v298 = vadd.f32 %v68, %v297
  %299 = vmatmul.bf16.gmra.mxu0 %v206
  %v300 = vpop.f32.mrf.mxu0
  %v301 = vadd.f32 %v68, %v300
  %v302 = vpop.f32.mrf.mxu0
  %v303 = vadd.f32 %v68, %v302
  %304 = vmatmul.bf16.gmra.mxu0 %v209
  %v305 = vpop.f32.mrf.mxu0
  %v306 = vadd.f32 %v68, %v305
  %v307 = vpop.f32.mrf.mxu0
  %v308 = vadd.f32 %v68, %v307
  %309 = vmatmul.bf16.gmra.mxu0 %v212
  %v310 = vpop.f32.mrf.mxu0
  %v311 = vadd.f32 %v68, %v310
  %v312 = vpop.f32.mrf.mxu0
  %v313 = vadd.f32 %v68, %v312
  %314 = vmatmul.bf16.gmra.mxu0 %v215
  %v315 = vpop.f32.mrf.mxu0
  %v316 = vadd.f32 %v68, %v315
  %v317 = vpop.f32.mrf.mxu0
  %v318 = vadd.f32 %v68, %v317
  %319 = vmatmul.bf16.gmra.mxu0 %v218
  %v320 = vpop.f32.mrf.mxu0
  %v321 = vadd.f32 %v68, %v320
  %v322 = vpop.f32.mrf.mxu0
  %v323 = vadd.f32 %v68, %v322
  %324 = vmatmul.bf16.gmra.mxu0 %v221
  %v325 = vpop.f32.mrf.mxu0
  %v326 = vadd.f32 %v68, %v325
  %v327 = vpop.f32.mrf.mxu0
  %v328 = vadd.f32 %v68, %v327
  %329 = vmatmul.bf16.gmra.mxu0 %v224
  %v330 = vpop.f32.mrf.mxu0
  %v331 = vadd.f32 %v68, %v330
  %v332 = vpop.f32.mrf.mxu0
  %v333 = vadd.f32 %v68, %v332
  %334 = vmatmul.bf16.gmra.mxu0 %v227
  %v335 = vpop.f32.mrf.mxu0
  %v336 = vadd.f32 %v68, %v335
  %v337 = vpop.f32.mrf.mxu0
  %v338 = vadd.f32 %v68, %v337
  %339 = vmatmul.bf16.gmra.mxu0 %v230
  %v340 = vpop.f32.mrf.mxu0
  %v341 = vadd.f32 %v68, %v340
  %v342 = vpop.f32.mrf.mxu0
  %v343 = vadd.f32 %v68, %v342
  %344 = vmatmul.bf16.gmra.mxu0 %v233
  %v345 = vpop.f32.mrf.mxu0
  %v346 = vadd.f32 %v68, %v345
  %v347 = vpop.f32.mrf.mxu0
  %v348 = vadd.f32 %v68, %v347
  %349 = vmatmul.bf16.gmra.mxu0 %v236
  %v350 = vpop.f32.mrf.mxu0
  %v351 = vadd.f32 %v68, %v350
  %v352 = vpop.f32.mrf.mxu0
  %v353 = vadd.f32 %v68, %v352
  %354 = vmatmul.bf16.gmra.mxu0 %v239
  %v355 = vpop.f32.mrf.mxu0
  %v356 = vadd.f32 %v68, %v355
  %v357 = vpop.f32.mrf.mxu0
  %v358 = vadd.f32 %v68, %v357
  %359 = vmatmul.bf16.gmra.mxu0 %v242
  %v360 = vpop.f32.mrf.mxu0
  %v361 = vadd.f32 %v68, %v360
  %v362 = vpop.f32.mrf.mxu0
  %v363 = vadd.f32 %v68, %v362
  %364 = vmatmul.bf16.gmra.mxu0 %v245
  %v365 = vpop.f32.mrf.mxu0
  %v366 = vadd.f32 %v68, %v365
  %v367 = vpop.f32.mrf.mxu0
  %v368 = vadd.f32 %v68, %v367
  %369 = vmatmul.bf16.gmra.mxu0 %v248
  %v370 = vpop.f32.mrf.mxu0
  %v371 = vadd.f32 %v68, %v370
  %v372 = vpop.f32.mrf.mxu0
  %v373 = vadd.f32 %v68, %v372
  %374 = vmatmul.bf16.gmra.mxu0 %v251
  %v375 = vpop.f32.mrf.mxu0
  %v376 = vadd.f32 %v68, %v375
  %v377 = vpop.f32.mrf.mxu0
  %v378 = vadd.f32 %v68, %v377
  %379 = vmatmul.bf16.gmra.mxu0 %v254
  %v380 = vpop.f32.mrf.mxu0
  %v381 = vadd.f32 %v68, %v380
  %v382 = vpop.f32.mrf.mxu0
  %v383 = vadd.f32 %v68, %v382
  %384 = vmatmul.bf16.gmra.mxu0 %v257
  %v385 = vpop.f32.mrf.mxu0
  %v386 = vadd.f32 %v68, %v385
  %v387 = vpop.f32.mrf.mxu0
  %v388 = vadd.f32 %v68, %v387
  %389 = vmatmul.bf16.gmra.mxu0 %v260
  %v390 = vpop.f32.mrf.mxu0
  %v391 = vadd.f32 %v68, %v390
  %v392 = vpop.f32.mrf.mxu0
  %v393 = vadd.f32 %v68, %v392
  %394 = vmatmul.bf16.gmra.mxu0 %v263
  %v395 = vpop.f32.mrf.mxu0
  %v396 = vadd.f32 %v68, %v395
  %v397 = vpop.f32.mrf.mxu0
  %v398 = vadd.f32 %v68, %v397
  %399 = vmatmul.bf16.gmra.mxu0 %v266
  %v400 = vpop.f32.mrf.mxu0
  %v401 = vadd.f32 %v68, %v400
  %v402 = vpop.f32.mrf.mxu0
  %v403 = vadd.f32 %v68, %v402
  %404 = vmatmul.bf16.gmra.mxu0 %v269
  %v405 = vpop.f32.mrf.mxu0
  %v406 = vadd.f32 %v68, %v405
  %v407 = vpop.f32.mrf.mxu0
  %v408 = vadd.f32 %v68, %v407
  %409 = vmatmul.bf16.gmra.mxu0 %v272
  %v410 = vpop.f32.mrf.mxu0
  %v411 = vadd.f32 %v68, %v410
  %v412 = vpop.f32.mrf.mxu0
  %413 = vdwg.mxu0
  %v414 = vmax.f32 %v291, 0.0
  %v415 = vmax.f32 %v293, 0.0
  %v416 = vmax.f32 %v296, 0.0
  %v417 = vmax.f32 %v298, 0.0
  %v418 = vmax.f32 %v301, 0.0
  %v419 = vmax.f32 %v303, 0.0
  %v420 = vmax.f32 %v306, 0.0
  %v421 = vmax.f32 %v308, 0.0
  %v422 = vmax.f32 %v311, 0.0
  %v423 = vmax.f32 %v313, 0.0
  %v424 = vmax.f32 %v316, 0.0
  %v425 = vmax.f32 %v318, 0.0
  %v426 = vmax.f32 %v321, 0.0
  %v427 = vmax.f32 %v323, 0.0
  %v428 = vmax.f32 %v326, 0.0
  %v429 = vmax.f32 %v328, 0.0
  %v430 = vmax.f32 %v331, 0.0
  %v431 = vmax.f32 %v333, 0.0
  %v432 = vmax.f32 %v336, 0.0
  %v433 = vmax.f32 %v338, 0.0
  %v434 = vmax.f32 %v341, 0.0
  %v435 = vmax.f32 %v343, 0.0
  %v436 = vmax.f32 %v346, 0.0
  %v437 = vmax.f32 %v348, 0.0
  %v438 = vmax.f32 %v351, 0.0
  %v439 = vmax.f32 %v353, 0.0
  %v440 = vmax.f32 %v356, 0.0
  %v441 = vmax.f32 %v358, 0.0
  %v442 = vmax.f32 %v361, 0.0
  %v443 = vmax.f32 %v363, 0.0
  %v444 = vmax.f32 %v366, 0.0
  %v445 = vmax.f32 %v368, 0.0
  %v446 = vmax.f32 %v371, 0.0
  %v447 = vmax.f32 %v373, 0.0
  %v448 = vmax.f32 %v376, 0.0
  %v449 = vmax.f32 %v378, 0.0
  %v450 = vmax.f32 %v381, 0.0
  %v451 = vmax.f32 %v383, 0.0
  %v452 = vmax.f32 %v386, 0.0
  %v453 = vmax.f32 %v388, 0.0
  %v454 = vmax.f32 %v391, 0.0
  %v455 = vmax.f32 %v393, 0.0
  %v456 = vmax.f32 %v396, 0.0
  %v457 = vmax.f32 %v398, 0.0
  %v458 = vmax.f32 %v401, 0.0
  %v459 = vmax.f32 %v403, 0.0
  %v460 = vmax.f32 %v406, 0.0
  %v461 = vmax.f32 %v408, 0.0
  %v462 = vmax.f32 %v411, 0.0
  %v463 = vpack.c.bf16 %v414, %v414
  %v464 = vpack.c.bf16 %v415, %v415
  %v465 = vpack.c.bf16 %v416, %v416
  %v466 = vpack.c.bf16 %v417, %v417
  %v467 = vpack.c.bf16 %v418, %v418
  %v468 = vpack.c.bf16 %v419, %v419
  %v469 = vpack.c.bf16 %v420, %v420
  %v470 = vpack.c.bf16 %v421, %v421
  %v471 = vpack.c.bf16 %v422, %v422
  %v472 = vpack.c.bf16 %v423, %v423
  %v473 = vpack.c.bf16 %v424, %v424
  %v474 = vpack.c.bf16 %v425, %v425
  %v475 = vpack.c.bf16 %v426, %v426
  %v476 = vpack.c.bf16 %v427, %v427
  %v477 = vpack.c.bf16 %v428, %v428
  %v478 = vpack.c.bf16 %v429, %v429
  %v479 = vpack.c.bf16 %v430, %v430
  %v480 = vpack.c.bf16 %v431, %v431
  %v481 = vpack.c.bf16 %v432, %v432
  %v482 = vpack.c.bf16 %v433, %v433
  %v483 = vpack.c.bf16 %v434, %v434
  %v484 = vpack.c.bf16 %v435, %v435
  %v485 = vpack.c.bf16 %v436, %v436
  %v486 = vpack.c.bf16 %v437, %v437
  %v487 = vpack.c.bf16 %v438, %v438
  %v488 = vpack.c.bf16 %v439, %v439
  %v489 = vpack.c.bf16 %v440, %v440
  %v490 = vpack.c.bf16 %v441, %v441
  %v491 = vpack.c.bf16 %v442, %v442
  %v492 = vpack.c.bf16 %v443, %v443
  %v493 = vpack.c.bf16 %v444, %v444
  %v494 = vpack.c.bf16 %v445, %v445
  %v495 = vpack.c.bf16 %v446, %v446
  %v496 = vpack.c.bf16 %v447, %v447
  %v497 = vpack.c.bf16 %v448, %v448
  %v498 = vpack.c.bf16 %v449, %v449
  %v499 = vpack.c.bf16 %v450, %v450
  %v500 = vpack.c.bf16 %v451, %v451
  %v501 = vpack.c.bf16 %v452, %v452
  %v502 = vpack.c.bf16 %v453, %v453
  %v503 = vpack.c.bf16 %v454, %v454
  %v504 = vpack.c.bf16 %v455, %v455
  %v505 = vpack.c.bf16 %v456, %v456
  %v506 = vpack.c.bf16 %v457, %v457
  %v507 = vpack.c.bf16 %v458, %v458
  %v508 = vpack.c.bf16 %v459, %v459
  %v509 = vpack.c.bf16 %v460, %v460
  %v510 = vpack.c.bf16 %v461, %v461
  %v511 = vpack.c.bf16 %v462, %v462
  %vm512 = vcmask 125952
  %513 = vst.msk [vmem:[%s3] sm:$0xf] %vm512, %v463
  %514 = vst.msk [vmem:[%s3 + $0x4] sm:$0xf] %vm512, %v464
  %515 = vst.msk [vmem:[%s3 + $0x8] sm:$0xf] %vm512, %v465
  %516 = vst.msk [vmem:[%s3 + $0xc] sm:$0xf] %vm512, %v466
  %517 = vst.msk [vmem:[%s3 + $0x10] sm:$0xf] %vm512, %v467
  %518 = vst.msk [vmem:[%s3 + $0x14] sm:$0xf] %vm512, %v468
  %519 = vst.msk [vmem:[%s3 + $0x18] sm:$0xf] %vm512, %v469
  %520 = vst.msk [vmem:[%s3 + $0x1c] sm:$0xf] %vm512, %v470
  %521 = vst.msk [vmem:[%s3 + $0x20] sm:$0xf] %vm512, %v471
  %522 = vst.msk [vmem:[%s3 + $0x24] sm:$0xf] %vm512, %v472
  %523 = vst.msk [vmem:[%s3 + $0x28] sm:$0xf] %vm512, %v473
  %524 = vst.msk [vmem:[%s3 + $0x2c] sm:$0xf] %vm512, %v474
  %525 = vst.msk [vmem:[%s3 + $0x30] sm:$0xf] %vm512, %v475
  %526 = vst.msk [vmem:[%s3 + $0x34] sm:$0xf] %vm512, %v476
  %527 = vst.msk [vmem:[%s3 + $0x38] sm:$0xf] %vm512, %v477
  %528 = vst.msk [vmem:[%s3 + $0x3c] sm:$0xf] %vm512, %v478
  %529 = vst.msk [vmem:[%s3 + $0x40] sm:$0xf] %vm512, %v479
  %530 = vst.msk [vmem:[%s3 + $0x44] sm:$0xf] %vm512, %v480
  %531 = vst.msk [vmem:[%s3 + $0x48] sm:$0xf] %vm512, %v481
  %532 = vst.msk [vmem:[%s3 + $0x4c] sm:$0xf] %vm512, %v482
  %533 = vst.msk [vmem:[%s3 + $0x50] sm:$0xf] %vm512, %v483
  %534 = vst.msk [vmem:[%s3 + $0x54] sm:$0xf] %vm512, %v484
  %535 = vst.msk [vmem:[%s3 + $0x58] sm:$0xf] %vm512, %v485
  %536 = vst.msk [vmem:[%s3 + $0x5c] sm:$0xf] %vm512, %v486
  %537 = vst.msk [vmem:[%s3 + $0x60] sm:$0xf] %vm512, %v487
  %538 = vst.msk [vmem:[%s3 + $0x64] sm:$0xf] %vm512, %v488
  %539 = vst.msk [vmem:[%s3 + $0x68] sm:$0xf] %vm512, %v489
  %540 = vst.msk [vmem:[%s3 + $0x6c] sm:$0xf] %vm512, %v490
  %541 = vst.msk [vmem:[%s3 + $0x70] sm:$0xf] %vm512, %v491
  %542 = vst.msk [vmem:[%s3 + $0x74] sm:$0xf] %vm512, %v492
  %543 = vst.msk [vmem:[%s3 + $0x78] sm:$0xf] %vm512, %v493
  %544 = vst.msk [vmem:[%s3 + $0x7c] sm:$0xf] %vm512, %v494
  %545 = vst.msk [vmem:[%s3 + $0x80] sm:$0xf] %vm512, %v495
  %546 = vst.msk [vmem:[%s3 + $0x84] sm:$0xf] %vm512, %v496
  %547 = vst.msk [vmem:[%s3 + $0x88] sm:$0xf] %vm512, %v497
  %548 = vst.msk [vmem:[%s3 + $0x8c] sm:$0xf] %vm512, %v498
  %549 = vst.msk [vmem:[%s3 + $0x90] sm:$0xf] %vm512, %v499
  %550 = vst.msk [vmem:[%s3 + $0x94] sm:$0xf] %vm512, %v500
  %551 = vst.msk [vmem:[%s3 + $0x98] sm:$0xf] %vm512, %v501
  %552 = vst.msk [vmem:[%s3 + $0x9c] sm:$0xf] %vm512, %v502
  %553 = vst.msk [vmem:[%s3 + $0xa0] sm:$0xf] %vm512, %v503
  %554 = vst.msk [vmem:[%s3 + $0xa4] sm:$0xf] %vm512, %v504
  %555 = vst.msk [vmem:[%s3 + $0xa8] sm:$0xf] %vm512, %v505
  %556 = vst.msk [vmem:[%s3 + $0xac] sm:$0xf] %vm512, %v506
  %557 = vst.msk [vmem:[%s3 + $0xb0] sm:$0xf] %vm512, %v507
  %558 = vst.msk [vmem:[%s3 + $0xb4] sm:$0xf] %vm512, %v508
  %559 = vst.msk [vmem:[%s3 + $0xb8] sm:$0xf] %vm512, %v509
  %560 = vst.msk [vmem:[%s3 + $0xbc] sm:$0xf] %vm512, %v510
  %561 = vst.msk [vmem:[%s3 + $0xc0] sm:$0xf] %vm512, %v511
  // Predicated region
  $region14: #{mnist_vae_forward.3} parent=0 // pred_check
    _
  $region15: #{mnist_vae_forward.3} parent=0 // pred_check_branch
    %563 = sbr.rel (0) target = $region17
  $region16: #{mnist_vae_forward.3} parent=0 // pred_region
    _
  $region17: #{mnist_vae_forward.3} parent=0 // pred_fallthru
    _
  // Predicated region
  $region18: #{mnist_vae_forward.3} parent=0 // pred_check
    _
  $region19: #{mnist_vae_forward.3} parent=0 // pred_check_branch
    %565 = sbr.rel (0) target = $region21
  $region20: #{mnist_vae_forward.3} parent=0 // pred_region
    _
  $region21: #{mnist_vae_forward.3} parent=0 // pred_fallthru
    _

// kernel: mnist_vae_forward.4
$region0: #{mnist_vae_forward.4}
  #allocation0 [shape = 'u32[]', space=smem, size = 0x4, offset = 0x4, fixed_abs, tag = 'smem constant byte address 0x4 - core index']
  #allocation1 [shape = 'u32[72,128]{1,0:T(1,128)}', space=vmem, size = 0x9000, scoped, tag = 'internal scratch']
  %s0 = inlined_call_operand.vmem [shape: bf16[98,144], index: 0, kind: input, shape index: {}]
  %s1 = inlined_call_operand.vmem [shape: bf16[144,32], index: 1, kind: input, shape index: {}]
  %s2 = inlined_call_operand.vmem [shape: f32[1,32], index: 2, kind: input, shape index: {}]
  %s3 = inlined_call_operand.vmem [shape: bf16[98,32], index: 3, kind: output, shape index: {}]
  %s4 = sld [smem:[#allocation0]]
  $region22: #{mnist_vae_forward.4} parent=0
    _
  %s6 = ssub.s32 1, %s4
  %s7 = scalar_select 0, %s6, %s4
  // Predicated region
  $region2: #{mnist_vae_forward.4} parent=0 // pred_check
    _
  $region3: #{mnist_vae_forward.4} parent=0 // pred_check_branch
    %9 = sbr.rel (0) target = $region5
  $region4: #{mnist_vae_forward.4} parent=0 // pred_region
    _
  $region5: #{mnist_vae_forward.4} parent=0 // pred_fallthru
    _
  // Predicated region
  $region6: #{mnist_vae_forward.4} parent=0 // pred_check
    _
  $region7: #{mnist_vae_forward.4} parent=0 // pred_check_branch
    %11 = sbr.rel (0) target = $region9
  $region8: #{mnist_vae_forward.4} parent=0 // pred_region
    _
  $region9: #{mnist_vae_forward.4} parent=0 // pred_fallthru
    _
  // Predicated region
  $region10: #{mnist_vae_forward.4} parent=0 // pred_check
    _
  $region11: #{mnist_vae_forward.4} parent=0 // pred_check_branch
    %13 = sbr.rel (0) target = $region13
  $region12: #{mnist_vae_forward.4} parent=0 // pred_region
    _
  $region13: #{mnist_vae_forward.4} parent=0 // pred_fallthru
    _
  %v15 = vld [vmem:[%s0] sm:$0xff]
  %v16 = vld [vmem:[%s0 + $0x8] sm:$0xff]
  %v17 = vld [vmem:[%s0 + $0x10] sm:$0xff]
  %v18 = vld [vmem:[%s0 + $0x18] sm:$0xff]
  %v19 = vld [vmem:[%s0 + $0x20] sm:$0xff]
  %v20 = vld [vmem:[%s0 + $0x28] sm:$0xff]
  %v21 = vld [vmem:[%s0 + $0x30] sm:$0xff]
  %v22 = vld [vmem:[%s0 + $0x38] sm:$0xff]
  %v23 = vld [vmem:[%s0 + $0x40] sm:$0xff]
  %v24 = vld [vmem:[%s0 + $0x48] sm:$0xff]
  %v25 = vld [vmem:[%s0 + $0x50] sm:$0xff]
  %v26 = vld [vmem:[%s0 + $0x58] sm:$0xff]
  %v27 = vld [vmem:[%s0 + $0x60] sm:$0x11]
  %v28 = vld [vmem:[%s1] sm:$0xf]
  %v29 = vld [vmem:[%s1 + $0x4] sm:$0xf]
  %v30 = vld [vmem:[%s1 + $0x8] sm:$0xf]
  %v31 = vld [vmem:[%s1 + $0xc] sm:$0xf]
  %v32 = vld [vmem:[%s1 + $0x10] sm:$0xf]
  %v33 = vld [vmem:[%s1 + $0x14] sm:$0xf]
  %v34 = vld [vmem:[%s1 + $0x18] sm:$0xf]
  %v35 = vld [vmem:[%s1 + $0x1c] sm:$0xf]
  %v36 = vld [vmem:[%s1 + $0x20] sm:$0xf]
  %v37 = vld [vmem:[%s1 + $0x24] sm:$0xf]
  %v38 = vld [vmem:[%s1 + $0x28] sm:$0xf]
  %v39 = vld [vmem:[%s1 + $0x2c] sm:$0xf]
  %v40 = vld [vmem:[%s1 + $0x30] sm:$0xf]
  %v41 = vld [vmem:[%s1 + $0x34] sm:$0xf]
  %v42 = vld [vmem:[%s1 + $0x38] sm:$0xf]
  %v43 = vld [vmem:[%s1 + $0x3c] sm:$0xf]
  %v44 = vld [vmem:[%s1 + $0x40] sm:$0xf]
  %v45 = vld [vmem:[%s1 + $0x44] sm:$0xf]
  %v46 = vld [vmem:[%s2] sm:$0x1]
  %v48 = vperm.slane %v46, 0
  %v63 = vunpack.c.l.b16 %v15
  %v64 = vunpack.c.h.b16 %v15
  %v65 = vunpack.c.l.b16 %v16
  %v66 = vunpack.c.h.b16 %v16
  %v67 = vunpack.c.l.b16 %v17
  %v68 = vunpack.c.h.b16 %v17
  %v69 = vunpack.c.l.b16 %v18
  %v70 = vunpack.c.h.b16 %v18
  %v71 = vunpack.c.l.b16 %v19
  %v72 = vunpack.c.h.b16 %v19
  %v73 = vunpack.c.l.b16 %v20
  %v74 = vunpack.c.h.b16 %v20
  %v75 = vunpack.c.l.b16 %v21
  %v76 = vunpack.c.h.b16 %v21
  %v77 = vunpack.c.l.b16 %v22
  %v78 = vunpack.c.h.b16 %v22
  %v79 = vunpack.c.l.b16 %v23
  %v80 = vunpack.c.h.b16 %v23
  %v81 = vunpack.c.l.b16 %v24
  %v82 = vunpack.c.h.b16 %v24
  %v83 = vunpack.c.l.b16 %v25
  %v84 = vunpack.c.h.b16 %v25
  %v85 = vunpack.c.l.b16 %v26
  %v86 = vunpack.c.h.b16 %v26
  %v87 = vunpack.c.l.b16 %v27
  %v88 = vunpack.c.h.b16 %v27
  %v89 = vpack.c.b16 %v65, %v63
  %v90 = vpack.c.b16 %v66, %v64
  %v91 = vpack.c.b16 %v69, %v67
  %v92 = vpack.c.b16 %v70, %v68
  %v93 = vpack.c.b16 %v73, %v71
  %v94 = vpack.c.b16 %v74, %v72
  %v95 = vpack.c.b16 %v77, %v75
  %v96 = vpack.c.b16 %v78, %v76
  %v97 = vpack.c.b16 %v81, %v79
  %v98 = vpack.c.b16 %v82, %v80
  %v99 = vpack.c.b16 %v85, %v83
  %v100 = vpack.c.b16 %v86, %v84
  %v101 = vpack.c.b16 %v87, %v87
  %v102 = vpack.c.b16 %v88, %v88
  %v128 = vunpack.c.l.b16 %v28
  %v129 = vunpack.c.l.b16 %v29
  %v130 = vunpack.c.l.b16 %v30
  %v131 = vunpack.c.l.b16 %v31
  %v132 = vunpack.c.l.b16 %v32
  %v133 = vunpack.c.l.b16 %v33
  %v134 = vunpack.c.l.b16 %v34
  %v135 = vunpack.c.l.b16 %v35
  %v136 = vunpack.c.l.b16 %v36
  %v137 = vunpack.c.l.b16 %v37
  %v138 = vunpack.c.l.b16 %v38
  %v139 = vunpack.c.l.b16 %v39
  %v140 = vunpack.c.l.b16 %v40
  %v141 = vunpack.c.l.b16 %v41
  %v142 = vunpack.c.l.b16 %v42
  %v143 = vunpack.c.l.b16 %v43
  %v144 = vunpack.c.l.b16 %v44
  %v145 = vunpack.c.l.b16 %v45
  %v146 = vpack.c.b16 %v129, %v128
  %v147 = vpack.c.b16 %v131, %v130
  %v148 = vpack.c.b16 %v133, %v132
  %v149 = vpack.c.b16 %v135, %v134
  %v150 = vpack.c.b16 %v137, %v136
  %v151 = vpack.c.b16 %v139, %v138
  %v152 = vpack.c.b16 %v141, %v140
  %v153 = vpack.c.b16 %v143, %v142
  %v154 = vpack.c.b16 %v145, %v144
  %vm164 = vcmask 130048
  %v166 = vsel %vm164, %v90, 0
  %v169 = vsel %vm164, %v92, 0
  %v172 = vsel %vm164, %v94, 0
  %v175 = vsel %vm164, %v96, 0
  %v178 = vsel %vm164, %v98, 0
  %v181 = vsel %vm164, %v100, 0
  %v184 = vsel %vm164, %v102, 0
  %186 = vmatpush.bf16.msra.mxu0 %v153
  %187 = vmatpush.bf16.msra.mxu0 %v152
  %188 = vmatpush.bf16.msra.mxu0 %v151
  %189 = vmatpush.bf16.msra.mxu0 %v150
  %190 = vmatpush.bf16.msra.mxu0 %v149
  %191 = vmatpush.bf16.msra.mxu0 %v148
  %192 = vmatpush.bf16.msra.mxu0 %v147
  %193 = vmatpush.bf16.msra.mxu0 %v146
  %194 = vmatmul.bf16.gmra.mxu0 %v89
  %v195 = vpop.f32.mrf.mxu0
  %v196 = vadd.f32 %v48, %v195
  %v197 = vpop.f32.mrf.mxu0
  %v198 = vadd.f32 %v48, %v197
  %199 = vmatmul.bf16.gmra.mxu0 %v91
  %v200 = vpop.f32.mrf.mxu0
  %v201 = vadd.f32 %v48, %v200
  %v202 = vpop.f32.mrf.mxu0
  %v203 = vadd.f32 %v48, %v202
  %204 = vmatmul.bf16.gmra.mxu0 %v93
  %v205 = vpop.f32.mrf.mxu0
  %v206 = vadd.f32 %v48, %v205
  %v207 = vpop.f32.mrf.mxu0
  %v208 = vadd.f32 %v48, %v207
  %209 = vmatmul.bf16.gmra.mxu0 %v95
  %v210 = vpop.f32.mrf.mxu0
  %v211 = vadd.f32 %v48, %v210
  %v212 = vpop.f32.mrf.mxu0
  %v213 = vadd.f32 %v48, %v212
  %214 = vmatmul.bf16.gmra.mxu0 %v97
  %v215 = vpop.f32.mrf.mxu0
  %v216 = vadd.f32 %v48, %v215
  %v217 = vpop.f32.mrf.mxu0
  %v218 = vadd.f32 %v48, %v217
  %219 = vmatmul.bf16.gmra.mxu0 %v99
  %v220 = vpop.f32.mrf.mxu0
  %v221 = vadd.f32 %v48, %v220
  %v222 = vpop.f32.mrf.mxu0
  %v223 = vadd.f32 %v48, %v222
  %224 = vmatmul.bf16.gmra.mxu0 %v101
  %v225 = vpop.f32.mrf.mxu0
  %v226 = vadd.f32 %v48, %v225
  %v227 = vpop.f32.mrf.mxu0
  %228 = vdwg.mxu0
  %229 = vmatpush.bf16.msra.mxu0 0
  %230 = vmatpush.bf16.msra.mxu0 0
  %231 = vmatpush.bf16.msra.mxu0 0
  %232 = vmatpush.bf16.msra.mxu0 0
  %233 = vmatpush.bf16.msra.mxu0 0
  %234 = vmatpush.bf16.msra.mxu0 0
  %235 = vmatpush.bf16.msra.mxu0 0
  %236 = vmatpush.bf16.msra.mxu0 %v154
  %237 = vmatmul.bf16.gmra.mxu0 %v166
  %v238 = vpop.f32.mrf.mxu0
  %v239 = vadd.f32 %v196, %v238
  %v240 = vpop.f32.mrf.mxu0
  %v241 = vadd.f32 %v198, %v240
  %242 = vmatmul.bf16.gmra.mxu0 %v169
  %v243 = vpop.f32.mrf.mxu0
  %v244 = vadd.f32 %v201, %v243
  %v245 = vpop.f32.mrf.mxu0
  %v246 = vadd.f32 %v203, %v245
  %247 = vmatmul.bf16.gmra.mxu0 %v172
  %v248 = vpop.f32.mrf.mxu0
  %v249 = vadd.f32 %v206, %v248
  %v250 = vpop.f32.mrf.mxu0
  %v251 = vadd.f32 %v208, %v250
  %252 = vmatmul.bf16.gmra.mxu0 %v175
  %v253 = vpop.f32.mrf.mxu0
  %v254 = vadd.f32 %v211, %v253
  %v255 = vpop.f32.mrf.mxu0
  %v256 = vadd.f32 %v213, %v255
  %257 = vmatmul.bf16.gmra.mxu0 %v178
  %v258 = vpop.f32.mrf.mxu0
  %v259 = vadd.f32 %v216, %v258
  %v260 = vpop.f32.mrf.mxu0
  %v261 = vadd.f32 %v218, %v260
  %262 = vmatmul.bf16.gmra.mxu0 %v181
  %v263 = vpop.f32.mrf.mxu0
  %v264 = vadd.f32 %v221, %v263
  %v265 = vpop.f32.mrf.mxu0
  %v266 = vadd.f32 %v223, %v265
  %267 = vmatmul.bf16.gmra.mxu0 %v184
  %v268 = vpop.f32.mrf.mxu0
  %v269 = vadd.f32 %v226, %v268
  %v270 = vpop.f32.mrf.mxu0
  %271 = vdwg.mxu0
  %v272 = vmax.f32 %v239, 0.0
  %v273 = vmax.f32 %v241, 0.0
  %v274 = vmax.f32 %v244, 0.0
  %v275 = vmax.f32 %v246, 0.0
  %v276 = vmax.f32 %v249, 0.0
  %v277 = vmax.f32 %v251, 0.0
  %v278 = vmax.f32 %v254, 0.0
  %v279 = vmax.f32 %v256, 0.0
  %v280 = vmax.f32 %v259, 0.0
  %v281 = vmax.f32 %v261, 0.0
  %v282 = vmax.f32 %v264, 0.0
  %v283 = vmax.f32 %v266, 0.0
  %v284 = vmax.f32 %v269, 0.0
  %v285 = vpack.c.bf16 %v272, %v272
  %v286 = vpack.c.bf16 %v273, %v273
  %v287 = vpack.c.bf16 %v274, %v274
  %v288 = vpack.c.bf16 %v275, %v275
  %v289 = vpack.c.bf16 %v276, %v276
  %v290 = vpack.c.bf16 %v277, %v277
  %v291 = vpack.c.bf16 %v278, %v278
  %v292 = vpack.c.bf16 %v279, %v279
  %v293 = vpack.c.bf16 %v280, %v280
  %v294 = vpack.c.bf16 %v281, %v281
  %v295 = vpack.c.bf16 %v282, %v282
  %v296 = vpack.c.bf16 %v283, %v283
  %v297 = vpack.c.bf16 %v284, %v284
  %vm298 = vcmask 257024
  %299 = vst.msk [vmem:[%s3] sm:$0xf] %vm298, %v285
  %300 = vst.msk [vmem:[%s3 + $0x4] sm:$0xf] %vm298, %v286
  %301 = vst.msk [vmem:[%s3 + $0x8] sm:$0xf] %vm298, %v287
  %302 = vst.msk [vmem:[%s3 + $0xc] sm:$0xf] %vm298, %v288
  %303 = vst.msk [vmem:[%s3 + $0x10] sm:$0xf] %vm298, %v289
  %304 = vst.msk [vmem:[%s3 + $0x14] sm:$0xf] %vm298, %v290
  %305 = vst.msk [vmem:[%s3 + $0x18] sm:$0xf] %vm298, %v291
  %306 = vst.msk [vmem:[%s3 + $0x1c] sm:$0xf] %vm298, %v292
  %307 = vst.msk [vmem:[%s3 + $0x20] sm:$0xf] %vm298, %v293
  %308 = vst.msk [vmem:[%s3 + $0x24] sm:$0xf] %vm298, %v294
  %309 = vst.msk [vmem:[%s3 + $0x28] sm:$0xf] %vm298, %v295
  %310 = vst.msk [vmem:[%s3 + $0x2c] sm:$0xf] %vm298, %v296
  %vm311 = vcmask 253952
  %312 = vst.msk [vmem:[%s3 + $0x30] sm:$0x1] %vm311, %v297
  // Predicated region
  $region14: #{mnist_vae_forward.4} parent=0 // pred_check
    _
  $region15: #{mnist_vae_forward.4} parent=0 // pred_check_branch
    %314 = sbr.rel (0) target = $region17
  $region16: #{mnist_vae_forward.4} parent=0 // pred_region
    _
  $region17: #{mnist_vae_forward.4} parent=0 // pred_fallthru
    _
  // Predicated region
  $region18: #{mnist_vae_forward.4} parent=0 // pred_check
    _
  $region19: #{mnist_vae_forward.4} parent=0 // pred_check_branch
    %316 = sbr.rel (0) target = $region21
  $region20: #{mnist_vae_forward.4} parent=0 // pred_region
    _
  $region21: #{mnist_vae_forward.4} parent=0 // pred_fallthru
    _

// kernel: mnist_vae_forward.5
$region0: #{mnist_vae_forward.5}
  #allocation0 [shape = 'u32[]', space=smem, size = 0x4, offset = 0x4, fixed_abs, tag = 'smem constant byte address 0x4 - core index']
  #allocation1 [shape = 'u32[72,128]{1,0:T(1,128)}', space=vmem, size = 0x9000, scoped, tag = 'internal scratch']
  %s0 = inlined_call_operand.vmem [shape: bf16[2,1568], index: 0, kind: input, shape index: {}]
  %s1 = inlined_call_operand.vmem [shape: bf16[1568,128], index: 1, kind: input, shape index: {}]
  %s2 = inlined_call_operand.vmem [shape: f32[1,128], index: 2, kind: input, shape index: {}]
  %s3 = inlined_call_operand.vmem [shape: f32[128,32], index: 3, kind: input, shape index: {}]
  %s4 = inlined_call_operand.vmem [shape: f32[1,32], index: 4, kind: input, shape index: {}]
  %s5 = inlined_call_operand.vmem [shape: f32[16,784], index: 5, kind: input, shape index: {}]
  %s6 = inlined_call_operand.vmem [shape: f32[1,784], index: 6, kind: input, shape index: {}]
  %s7 = inlined_call_operand.vmem [shape: f32[2,16], index: 7, kind: input, shape index: {}]
  %s8 = inlined_call_operand.vmem [shape: f32[2,784], index: 8, kind: output, shape index: {0}]
  %s9 = inlined_call_operand.hbm [shape: f32[2,16], index: 9, kind: output, shape index: {1}]
  %s10 = inlined_call_operand.hbm [shape: f32[2,16], index: 10, kind: output, shape index: {2}]
  %11 = xla_tuple %s8, %s9, %s10
  %s12 = sld [smem:[#allocation0]]
  $region58: #{mnist_vae_forward.5} parent=0
    _
  %s14 = ssub.s32 1, %s12
  %s15 = scalar_select 0, %s14, %s12
  $region1: #{mnist_vae_forward.5} parent=0
    #allocation2 [shape = 'u8[1024]{0}', space=vmem, size = 0x400, scoped, tag = 'output window, operand 1, single buffered']
    #allocation3 [shape = 's32[1]{0}', space=sflag, size = 0x4, scoped, tag = 'scoped memory for mnist_vae_forward.5']
    #allocation4 [shape = 'u8[1024]{0}', space=vmem, size = 0x400, scoped, tag = 'output window, operand 2, single buffered']
    #allocation5 [shape = 's32[1]{0}', space=sflag, size = 0x4, scoped, tag = 'scoped memory for mnist_vae_forward.5']
    %16 = vsyncpa [#allocation3], 0
    %17 = vsyncpa [#allocation5], 0
    // Predicated region
    $region2: #{mnist_vae_forward.5} parent=1 // pred_check
      _
    $region3: #{mnist_vae_forward.5} parent=1 // pred_check_branch
      %19 = sbr.rel (0) target = $region5
    $region4: #{mnist_vae_forward.5} parent=1 // pred_region
      _
    $region5: #{mnist_vae_forward.5} parent=1 // pred_fallthru
      _
    // Predicated region
    $region6: #{mnist_vae_forward.5} parent=1 // pred_check
      _
    $region7: #{mnist_vae_forward.5} parent=1 // pred_check_branch
      %21 = sbr.rel (0) target = $region9
    $region8: #{mnist_vae_forward.5} parent=1 // pred_region
      _
    $region9: #{mnist_vae_forward.5} parent=1 // pred_fallthru
      _
    // Predicated region
    $region10: #{mnist_vae_forward.5} parent=1 // pred_check
      _
    $region11: #{mnist_vae_forward.5} parent=1 // pred_check_branch
      %23 = sbr.rel (0) target = $region13
    $region12: #{mnist_vae_forward.5} parent=1 // pred_region
      _
    $region13: #{mnist_vae_forward.5} parent=1 // pred_fallthru
      _
    // Predicated region
    $region14: #{mnist_vae_forward.5} parent=1 // pred_check
      _
    $region15: #{mnist_vae_forward.5} parent=1 // pred_check_branch
      %25 = sbr.rel (0) target = $region17
    $region16: #{mnist_vae_forward.5} parent=1 // pred_region
      _
    $region17: #{mnist_vae_forward.5} parent=1 // pred_fallthru
      _
    // Predicated region
    $region18: #{mnist_vae_forward.5} parent=1 // pred_check
      _
    $region19: #{mnist_vae_forward.5} parent=1 // pred_check_branch
      %27 = sbr.rel (0) target = $region21
    $region20: #{mnist_vae_forward.5} parent=1 // pred_region
      _
    $region21: #{mnist_vae_forward.5} parent=1 // pred_fallthru
      _
    // Predicated region
    $region22: #{mnist_vae_forward.5} parent=1 // pred_check
      _
    $region23: #{mnist_vae_forward.5} parent=1 // pred_check_branch
      %29 = sbr.rel (0) target = $region25
    $region24: #{mnist_vae_forward.5} parent=1 // pred_region
      _
    $region25: #{mnist_vae_forward.5} parent=1 // pred_fallthru
      _
    // Predicated region
    $region26: #{mnist_vae_forward.5} parent=1 // pred_check
      _
    $region27: #{mnist_vae_forward.5} parent=1 // pred_check_branch
      %31 = sbr.rel (0) target = $region29
    $region28: #{mnist_vae_forward.5} parent=1 // pred_region
      _
    $region29: #{mnist_vae_forward.5} parent=1 // pred_fallthru
      _
    // Predicated region
    $region30: #{mnist_vae_forward.5} parent=1 // pred_check
      _
    $region31: #{mnist_vae_forward.5} parent=1 // pred_check_branch
      %33 = sbr.rel (0) target = $region33
    $region32: #{mnist_vae_forward.5} parent=1 // pred_region
      _
    $region33: #{mnist_vae_forward.5} parent=1 // pred_fallthru
      _
    %v35 = vld [vmem:[%s0] sm:$0xff]
    %v36 = vld [vmem:[%s0 + $0x8] sm:$0x1f]
    %v37 = vld [vmem:[%s1] sm:$0xf]
    %v38 = vld [vmem:[%s1 + $0x4] sm:$0xf]
    %v39 = vld [vmem:[%s1 + $0x8] sm:$0xf]
    %v40 = vld [vmem:[%s1 + $0xc] sm:$0xf]
    %v41 = vld [vmem:[%s1 + $0x10] sm:$0xf]
    %v42 = vld [vmem:[%s1 + $0x14] sm:$0xf]
    %v43 = vld [vmem:[%s1 + $0x18] sm:$0xf]
    %v44 = vld [vmem:[%s1 + $0x1c] sm:$0xf]
    %v45 = vld [vmem:[%s1 + $0x20] sm:$0xf]
    %v46 = vld [vmem:[%s1 + $0x24] sm:$0xf]
    %v47 = vld [vmem:[%s1 + $0x28] sm:$0xf]
    %v48 = vld [vmem:[%s1 + $0x2c] sm:$0xf]
    %v49 = vld [vmem:[%s1 + $0x30] sm:$0xf]
    %v50 = vld [vmem:[%s1 + $0x34] sm:$0xf]
    %v51 = vld [vmem:[%s1 + $0x38] sm:$0xf]
    %v52 = vld [vmem:[%s1 + $0x3c] sm:$0xf]
    %v53 = vld [vmem:[%s1 + $0x40] sm:$0xf]
    %v54 = vld [vmem:[%s1 + $0x44] sm:$0xf]
    %v55 = vld [vmem:[%s1 + $0x48] sm:$0xf]
    %v56 = vld [vmem:[%s1 + $0x4c] sm:$0xf]
    %v57 = vld [vmem:[%s1 + $0x50] sm:$0xf]
    %v58 = vld [vmem:[%s1 + $0x54] sm:$0xf]
    %v59 = vld [vmem:[%s1 + $0x58] sm:$0xf]
    %v60 = vld [vmem:[%s1 + $0x5c] sm:$0xf]
    %v61 = vld [vmem:[%s1 + $0x60] sm:$0xf]
    %v62 = vld [vmem:[%s1 + $0x64] sm:$0xf]
    %v63 = vld [vmem:[%s1 + $0x68] sm:$0xf]
    %v64 = vld [vmem:[%s1 + $0x6c] sm:$0xf]
    %v65 = vld [vmem:[%s1 + $0x70] sm:$0xf]
    %v66 = vld [vmem:[%s1 + $0x74] sm:$0xf]
    %v67 = vld [vmem:[%s1 + $0x78] sm:$0xf]
    %v68 = vld [vmem:[%s1 + $0x7c] sm:$0xf]
    %v69 = vld [vmem:[%s1 + $0x80] sm:$0xf]
    %v70 = vld [vmem:[%s1 + $0x84] sm:$0xf]
    %v71 = vld [vmem:[%s1 + $0x88] sm:$0xf]
    %v72 = vld [vmem:[%s1 + $0x8c] sm:$0xf]
    %v73 = vld [vmem:[%s1 + $0x90] sm:$0xf]
    %v74 = vld [vmem:[%s1 + $0x94] sm:$0xf]
    %v75 = vld [vmem:[%s1 + $0x98] sm:$0xf]
    %v76 = vld [vmem:[%s1 + $0x9c] sm:$0xf]
    %v77 = vld [vmem:[%s1 + $0xa0] sm:$0xf]
    %v78 = vld [vmem:[%s1 + $0xa4] sm:$0xf]
    %v79 = vld [vmem:[%s1 + $0xa8] sm:$0xf]
    %v80 = vld [vmem:[%s1 + $0xac] sm:$0xf]
    %v81 = vld [vmem:[%s1 + $0xb0] sm:$0xf]
    %v82 = vld [vmem:[%s1 + $0xb4] sm:$0xf]
    %v83 = vld [vmem:[%s1 + $0xb8] sm:$0xf]
    %v84 = vld [vmem:[%s1 + $0xbc] sm:$0xf]
    %v85 = vld [vmem:[%s1 + $0xc0] sm:$0xf]
    %v86 = vld [vmem:[%s1 + $0xc4] sm:$0xf]
    %v87 = vld [vmem:[%s1 + $0xc8] sm:$0xf]
    %v88 = vld [vmem:[%s1 + $0xcc] sm:$0xf]
    %v89 = vld [vmem:[%s1 + $0xd0] sm:$0xf]
    %v90 = vld [vmem:[%s1 + $0xd4] sm:$0xf]
    %v91 = vld [vmem:[%s1 + $0xd8] sm:$0xf]
    %v92 = vld [vmem:[%s1 + $0xdc] sm:$0xf]
    %v93 = vld [vmem:[%s1 + $0xe0] sm:$0xf]
    %v94 = vld [vmem:[%s1 + $0xe4] sm:$0xf]
    %v95 = vld [vmem:[%s1 + $0xe8] sm:$0xf]
    %v96 = vld [vmem:[%s1 + $0xec] sm:$0xf]
    %v97 = vld [vmem:[%s1 + $0xf0] sm:$0xf]
    %v98 = vld [vmem:[%s1 + $0xf4] sm:$0xf]
    %v99 = vld [vmem:[%s1 + $0xf8] sm:$0xf]
    %v100 = vld [vmem:[%s1 + $0xfc] sm:$0xf]
    %v101 = vld [vmem:[%s1 + $0x100] sm:$0xf]
    %v102 = vld [vmem:[%s1 + $0x104] sm:$0xf]
    %v103 = vld [vmem:[%s1 + $0x108] sm:$0xf]
    %v104 = vld [vmem:[%s1 + $0x10c] sm:$0xf]
    %v105 = vld [vmem:[%s1 + $0x110] sm:$0xf]
    %v106 = vld [vmem:[%s1 + $0x114] sm:$0xf]
    %v107 = vld [vmem:[%s1 + $0x118] sm:$0xf]
    %v108 = vld [vmem:[%s1 + $0x11c] sm:$0xf]
    %v109 = vld [vmem:[%s1 + $0x120] sm:$0xf]
    %v110 = vld [vmem:[%s1 + $0x124] sm:$0xf]
    %v111 = vld [vmem:[%s1 + $0x128] sm:$0xf]
    %v112 = vld [vmem:[%s1 + $0x12c] sm:$0xf]
    %v113 = vld [vmem:[%s1 + $0x130] sm:$0xf]
    %v114 = vld [vmem:[%s1 + $0x134] sm:$0xf]
    %v115 = vld [vmem:[%s1 + $0x138] sm:$0xf]
    %v116 = vld [vmem:[%s1 + $0x13c] sm:$0xf]
    %v117 = vld [vmem:[%s1 + $0x140] sm:$0xf]
    %v118 = vld [vmem:[%s1 + $0x144] sm:$0xf]
    %v119 = vld [vmem:[%s1 + $0x148] sm:$0xf]
    %v120 = vld [vmem:[%s1 + $0x14c] sm:$0xf]
    %v121 = vld [vmem:[%s1 + $0x150] sm:$0xf]
    %v122 = vld [vmem:[%s1 + $0x154] sm:$0xf]
    %v123 = vld [vmem:[%s1 + $0x158] sm:$0xf]
    %v124 = vld [vmem:[%s1 + $0x15c] sm:$0xf]
    %v125 = vld [vmem:[%s1 + $0x160] sm:$0xf]
    %v126 = vld [vmem:[%s1 + $0x164] sm:$0xf]
    %v127 = vld [vmem:[%s1 + $0x168] sm:$0xf]
    %v128 = vld [vmem:[%s1 + $0x16c] sm:$0xf]
    %v129 = vld [vmem:[%s1 + $0x170] sm:$0xf]
    %v130 = vld [vmem:[%s1 + $0x174] sm:$0xf]
    %v131 = vld [vmem:[%s1 + $0x178] sm:$0xf]
    %v132 = vld [vmem:[%s1 + $0x17c] sm:$0xf]
    %v133 = vld [vmem:[%s1 + $0x180] sm:$0xf]
    %v134 = vld [vmem:[%s1 + $0x184] sm:$0xf]
    %v135 = vld [vmem:[%s1 + $0x188] sm:$0xf]
    %v136 = vld [vmem:[%s1 + $0x18c] sm:$0xf]
    %v137 = vld [vmem:[%s1 + $0x190] sm:$0xf]
    %v138 = vld [vmem:[%s1 + $0x194] sm:$0xf]
    %v139 = vld [vmem:[%s1 + $0x198] sm:$0xf]
    %v140 = vld [vmem:[%s1 + $0x19c] sm:$0xf]
    %v141 = vld [vmem:[%s1 + $0x1a0] sm:$0xf]
    %v142 = vld [vmem:[%s1 + $0x1a4] sm:$0xf]
    %v143 = vld [vmem:[%s1 + $0x1a8] sm:$0xf]
    %v144 = vld [vmem:[%s1 + $0x1ac] sm:$0xf]
    %v145 = vld [vmem:[%s1 + $0x1b0] sm:$0xf]
    %v146 = vld [vmem:[%s1 + $0x1b4] sm:$0xf]
    %v147 = vld [vmem:[%s1 + $0x1b8] sm:$0xf]
    %v148 = vld [vmem:[%s1 + $0x1bc] sm:$0xf]
    %v149 = vld [vmem:[%s1 + $0x1c0] sm:$0xf]
    %v150 = vld [vmem:[%s1 + $0x1c4] sm:$0xf]
    %v151 = vld [vmem:[%s1 + $0x1c8] sm:$0xf]
    %v152 = vld [vmem:[%s1 + $0x1cc] sm:$0xf]
    %v153 = vld [vmem:[%s1 + $0x1d0] sm:$0xf]
    %v154 = vld [vmem:[%s1 + $0x1d4] sm:$0xf]
    %v155 = vld [vmem:[%s1 + $0x1d8] sm:$0xf]
    %v156 = vld [vmem:[%s1 + $0x1dc] sm:$0xf]
    %v157 = vld [vmem:[%s1 + $0x1e0] sm:$0xf]
    %v158 = vld [vmem:[%s1 + $0x1e4] sm:$0xf]
    %v159 = vld [vmem:[%s1 + $0x1e8] sm:$0xf]
    %v160 = vld [vmem:[%s1 + $0x1ec] sm:$0xf]
    %v161 = vld [vmem:[%s1 + $0x1f0] sm:$0xf]
    %v162 = vld [vmem:[%s1 + $0x1f4] sm:$0xf]
    %v163 = vld [vmem:[%s1 + $0x1f8] sm:$0xf]
    %v164 = vld [vmem:[%s1 + $0x1fc] sm:$0xf]
    %v165 = vld [vmem:[%s1 + $0x200] sm:$0xf]
    %v166 = vld [vmem:[%s1 + $0x204] sm:$0xf]
    %v167 = vld [vmem:[%s1 + $0x208] sm:$0xf]
    %v168 = vld [vmem:[%s1 + $0x20c] sm:$0xf]
    %v169 = vld [vmem:[%s1 + $0x210] sm:$0xf]
    %v170 = vld [vmem:[%s1 + $0x214] sm:$0xf]
    %v171 = vld [vmem:[%s1 + $0x218] sm:$0xf]
    %v172 = vld [vmem:[%s1 + $0x21c] sm:$0xf]
    %v173 = vld [vmem:[%s1 + $0x220] sm:$0xf]
    %v174 = vld [vmem:[%s1 + $0x224] sm:$0xf]
    %v175 = vld [vmem:[%s1 + $0x228] sm:$0xf]
    %v176 = vld [vmem:[%s1 + $0x22c] sm:$0xf]
    %v177 = vld [vmem:[%s1 + $0x230] sm:$0xf]
    %v178 = vld [vmem:[%s1 + $0x234] sm:$0xf]
    %v179 = vld [vmem:[%s1 + $0x238] sm:$0xf]
    %v180 = vld [vmem:[%s1 + $0x23c] sm:$0xf]
    %v181 = vld [vmem:[%s1 + $0x240] sm:$0xf]
    %v182 = vld [vmem:[%s1 + $0x244] sm:$0xf]
    %v183 = vld [vmem:[%s1 + $0x248] sm:$0xf]
    %v184 = vld [vmem:[%s1 + $0x24c] sm:$0xf]
    %v185 = vld [vmem:[%s1 + $0x250] sm:$0xf]
    %v186 = vld [vmem:[%s1 + $0x254] sm:$0xf]
    %v187 = vld [vmem:[%s1 + $0x258] sm:$0xf]
    %v188 = vld [vmem:[%s1 + $0x25c] sm:$0xf]
    %v189 = vld [vmem:[%s1 + $0x260] sm:$0xf]
    %v190 = vld [vmem:[%s1 + $0x264] sm:$0xf]
    %v191 = vld [vmem:[%s1 + $0x268] sm:$0xf]
    %v192 = vld [vmem:[%s1 + $0x26c] sm:$0xf]
    %v193 = vld [vmem:[%s1 + $0x270] sm:$0xf]
    %v194 = vld [vmem:[%s1 + $0x274] sm:$0xf]
    %v195 = vld [vmem:[%s1 + $0x278] sm:$0xf]
    %v196 = vld [vmem:[%s1 + $0x27c] sm:$0xf]
    %v197 = vld [vmem:[%s1 + $0x280] sm:$0xf]
    %v198 = vld [vmem:[%s1 + $0x284] sm:$0xf]
    %v199 = vld [vmem:[%s1 + $0x288] sm:$0xf]
    %v200 = vld [vmem:[%s1 + $0x28c] sm:$0xf]
    %v201 = vld [vmem:[%s1 + $0x290] sm:$0xf]
    %v202 = vld [vmem:[%s1 + $0x294] sm:$0xf]
    %v203 = vld [vmem:[%s1 + $0x298] sm:$0xf]
    %v204 = vld [vmem:[%s1 + $0x29c] sm:$0xf]
    %v205 = vld [vmem:[%s1 + $0x2a0] sm:$0xf]
    %v206 = vld [vmem:[%s1 + $0x2a4] sm:$0xf]
    %v207 = vld [vmem:[%s1 + $0x2a8] sm:$0xf]
    %v208 = vld [vmem:[%s1 + $0x2ac] sm:$0xf]
    %v209 = vld [vmem:[%s1 + $0x2b0] sm:$0xf]
    %v210 = vld [vmem:[%s1 + $0x2b4] sm:$0xf]
    %v211 = vld [vmem:[%s1 + $0x2b8] sm:$0xf]
    %v212 = vld [vmem:[%s1 + $0x2bc] sm:$0xf]
    %v213 = vld [vmem:[%s1 + $0x2c0] sm:$0xf]
    %v214 = vld [vmem:[%s1 + $0x2c4] sm:$0xf]
    %v215 = vld [vmem:[%s1 + $0x2c8] sm:$0xf]
    %v216 = vld [vmem:[%s1 + $0x2cc] sm:$0xf]
    %v217 = vld [vmem:[%s1 + $0x2d0] sm:$0xf]
    %v218 = vld [vmem:[%s1 + $0x2d4] sm:$0xf]
    %v219 = vld [vmem:[%s1 + $0x2d8] sm:$0xf]
    %v220 = vld [vmem:[%s1 + $0x2dc] sm:$0xf]
    %v221 = vld [vmem:[%s1 + $0x2e0] sm:$0xf]
    %v222 = vld [vmem:[%s1 + $0x2e4] sm:$0xf]
    %v223 = vld [vmem:[%s1 + $0x2e8] sm:$0xf]
    %v224 = vld [vmem:[%s1 + $0x2ec] sm:$0xf]
    %v225 = vld [vmem:[%s1 + $0x2f0] sm:$0xf]
    %v226 = vld [vmem:[%s1 + $0x2f4] sm:$0xf]
    %v227 = vld [vmem:[%s1 + $0x2f8] sm:$0xf]
    %v228 = vld [vmem:[%s1 + $0x2fc] sm:$0xf]
    %v229 = vld [vmem:[%s1 + $0x300] sm:$0xf]
    %v230 = vld [vmem:[%s1 + $0x304] sm:$0xf]
    %v231 = vld [vmem:[%s1 + $0x308] sm:$0xf]
    %v232 = vld [vmem:[%s1 + $0x30c] sm:$0xf]
    %v233 = vld [vmem:[%s2] sm:$0x1]
    %v235 = vperm.slane %v233, 0
    %238 = vst [vmem:[#allocation1] ss:$9 sm:$0xff] %v35
    %v239 = vld [vmem:[#allocation1] sm:$0xff]
    %v240 = vld [vmem:[#allocation1 + $0x9] sm:$0xff]
    %v241 = vld [vmem:[#allocation1 + $0x12] sm:$0xff]
    %v242 = vld [vmem:[#allocation1 + $0x1b] sm:$0xff]
    %v243 = vld [vmem:[#allocation1 + $0x24] sm:$0xff]
    %v244 = vld [vmem:[#allocation1 + $0x2d] sm:$0xff]
    %v245 = vld [vmem:[#allocation1 + $0x36] sm:$0xff]
    %v246 = vld [vmem:[#allocation1 + $0x3f] sm:$0xff]
    %248 = vst [vmem:[#allocation1] ss:$9 sm:$0xff] %v36
    %v249 = vld [vmem:[#allocation1] sm:$0xff]
    %v250 = vld [vmem:[#allocation1 + $0x9] sm:$0xff]
    %v251 = vld [vmem:[#allocation1 + $0x12] sm:$0xff]
    %v252 = vld [vmem:[#allocation1 + $0x1b] sm:$0xff]
    %v253 = vld [vmem:[#allocation1 + $0x24] sm:$0xff]
    %v462 = vunpack.c.l.b16 %v37
    %v463 = vunpack.c.l.b16 %v38
    %v464 = vunpack.c.l.b16 %v39
    %v465 = vunpack.c.l.b16 %v40
    %v466 = vunpack.c.l.b16 %v41
    %v467 = vunpack.c.l.b16 %v42
    %v468 = vunpack.c.l.b16 %v43
    %v469 = vunpack.c.l.b16 %v44
    %v470 = vunpack.c.l.b16 %v45
    %v471 = vunpack.c.l.b16 %v46
    %v472 = vunpack.c.l.b16 %v47
    %v473 = vunpack.c.l.b16 %v48
    %v474 = vunpack.c.l.b16 %v49
    %v475 = vunpack.c.l.b16 %v50
    %v476 = vunpack.c.l.b16 %v51
    %v477 = vunpack.c.l.b16 %v52
    %v478 = vunpack.c.l.b16 %v53
    %v479 = vunpack.c.l.b16 %v54
    %v480 = vunpack.c.l.b16 %v55
    %v481 = vunpack.c.l.b16 %v56
    %v482 = vunpack.c.l.b16 %v57
    %v483 = vunpack.c.l.b16 %v58
    %v484 = vunpack.c.l.b16 %v59
    %v485 = vunpack.c.l.b16 %v60
    %v486 = vunpack.c.l.b16 %v61
    %v487 = vunpack.c.l.b16 %v62
    %v488 = vunpack.c.l.b16 %v63
    %v489 = vunpack.c.l.b16 %v64
    %v490 = vunpack.c.l.b16 %v65
    %v491 = vunpack.c.l.b16 %v66
    %v492 = vunpack.c.l.b16 %v67
    %v493 = vunpack.c.l.b16 %v68
    %v494 = vunpack.c.l.b16 %v69
    %v495 = vunpack.c.l.b16 %v70
    %v496 = vunpack.c.l.b16 %v71
    %v497 = vunpack.c.l.b16 %v72
    %v498 = vunpack.c.l.b16 %v73
    %v499 = vunpack.c.l.b16 %v74
    %v500 = vunpack.c.l.b16 %v75
    %v501 = vunpack.c.l.b16 %v76
    %v502 = vunpack.c.l.b16 %v77
    %v503 = vunpack.c.l.b16 %v78
    %v504 = vunpack.c.l.b16 %v79
    %v505 = vunpack.c.l.b16 %v80
    %v506 = vunpack.c.l.b16 %v81
    %v507 = vunpack.c.l.b16 %v82
    %v508 = vunpack.c.l.b16 %v83
    %v509 = vunpack.c.l.b16 %v84
    %v510 = vunpack.c.l.b16 %v85
    %v511 = vunpack.c.l.b16 %v86
    %v512 = vunpack.c.l.b16 %v87
    %v513 = vunpack.c.l.b16 %v88
    %v514 = vunpack.c.l.b16 %v89
    %v515 = vunpack.c.l.b16 %v90
    %v516 = vunpack.c.l.b16 %v91
    %v517 = vunpack.c.l.b16 %v92
    %v518 = vunpack.c.l.b16 %v93
    %v519 = vunpack.c.l.b16 %v94
    %v520 = vunpack.c.l.b16 %v95
    %v521 = vunpack.c.l.b16 %v96
    %v522 = vunpack.c.l.b16 %v97
    %v523 = vunpack.c.l.b16 %v98
    %v524 = vunpack.c.l.b16 %v99
    %v525 = vunpack.c.l.b16 %v100
    %v526 = vunpack.c.l.b16 %v101
    %v527 = vunpack.c.l.b16 %v102
    %v528 = vunpack.c.l.b16 %v103
    %v529 = vunpack.c.l.b16 %v104
    %v530 = vunpack.c.l.b16 %v105
    %v531 = vunpack.c.l.b16 %v106
    %v532 = vunpack.c.l.b16 %v107
    %v533 = vunpack.c.l.b16 %v108
    %v534 = vunpack.c.l.b16 %v109
    %v535 = vunpack.c.l.b16 %v110
    %v536 = vunpack.c.l.b16 %v111
    %v537 = vunpack.c.l.b16 %v112
    %v538 = vunpack.c.l.b16 %v113
    %v539 = vunpack.c.l.b16 %v114
    %v540 = vunpack.c.l.b16 %v115
    %v541 = vunpack.c.l.b16 %v116
    %v542 = vunpack.c.l.b16 %v117
    %v543 = vunpack.c.l.b16 %v118
    %v544 = vunpack.c.l.b16 %v119
    %v545 = vunpack.c.l.b16 %v120
    %v546 = vunpack.c.l.b16 %v121
    %v547 = vunpack.c.l.b16 %v122
    %v548 = vunpack.c.l.b16 %v123
    %v549 = vunpack.c.l.b16 %v124
    %v550 = vunpack.c.l.b16 %v125
    %v551 = vunpack.c.l.b16 %v126
    %v552 = vunpack.c.l.b16 %v127
    %v553 = vunpack.c.l.b16 %v128
    %v554 = vunpack.c.l.b16 %v129
    %v555 = vunpack.c.l.b16 %v130
    %v556 = vunpack.c.l.b16 %v131
    %v557 = vunpack.c.l.b16 %v132
    %v558 = vunpack.c.l.b16 %v133
    %v559 = vunpack.c.l.b16 %v134
    %v560 = vunpack.c.l.b16 %v135
    %v561 = vunpack.c.l.b16 %v136
    %v562 = vunpack.c.l.b16 %v137
    %v563 = vunpack.c.l.b16 %v138
    %v564 = vunpack.c.l.b16 %v139
    %v565 = vunpack.c.l.b16 %v140
    %v566 = vunpack.c.l.b16 %v141
    %v567 = vunpack.c.l.b16 %v142
    %v568 = vunpack.c.l.b16 %v143
    %v569 = vunpack.c.l.b16 %v144
    %v570 = vunpack.c.l.b16 %v145
    %v571 = vunpack.c.l.b16 %v146
    %v572 = vunpack.c.l.b16 %v147
    %v573 = vunpack.c.l.b16 %v148
    %v574 = vunpack.c.l.b16 %v149
    %v575 = vunpack.c.l.b16 %v150
    %v576 = vunpack.c.l.b16 %v151
    %v577 = vunpack.c.l.b16 %v152
    %v578 = vunpack.c.l.b16 %v153
    %v579 = vunpack.c.l.b16 %v154
    %v580 = vunpack.c.l.b16 %v155
    %v581 = vunpack.c.l.b16 %v156
    %v582 = vunpack.c.l.b16 %v157
    %v583 = vunpack.c.l.b16 %v158
    %v584 = vunpack.c.l.b16 %v159
    %v585 = vunpack.c.l.b16 %v160
    %v586 = vunpack.c.l.b16 %v161
    %v587 = vunpack.c.l.b16 %v162
    %v588 = vunpack.c.l.b16 %v163
    %v589 = vunpack.c.l.b16 %v164
    %v590 = vunpack.c.l.b16 %v165
    %v591 = vunpack.c.l.b16 %v166
    %v592 = vunpack.c.l.b16 %v167
    %v593 = vunpack.c.l.b16 %v168
    %v594 = vunpack.c.l.b16 %v169
    %v595 = vunpack.c.l.b16 %v170
    %v596 = vunpack.c.l.b16 %v171
    %v597 = vunpack.c.l.b16 %v172
    %v598 = vunpack.c.l.b16 %v173
    %v599 = vunpack.c.l.b16 %v174
    %v600 = vunpack.c.l.b16 %v175
    %v601 = vunpack.c.l.b16 %v176
    %v602 = vunpack.c.l.b16 %v177
    %v603 = vunpack.c.l.b16 %v178
    %v604 = vunpack.c.l.b16 %v179
    %v605 = vunpack.c.l.b16 %v180
    %v606 = vunpack.c.l.b16 %v181
    %v607 = vunpack.c.l.b16 %v182
    %v608 = vunpack.c.l.b16 %v183
    %v609 = vunpack.c.l.b16 %v184
    %v610 = vunpack.c.l.b16 %v185
    %v611 = vunpack.c.l.b16 %v186
    %v612 = vunpack.c.l.b16 %v187
    %v613 = vunpack.c.l.b16 %v188
    %v614 = vunpack.c.l.b16 %v189
    %v615 = vunpack.c.l.b16 %v190
    %v616 = vunpack.c.l.b16 %v191
    %v617 = vunpack.c.l.b16 %v192
    %v618 = vunpack.c.l.b16 %v193
    %v619 = vunpack.c.l.b16 %v194
    %v620 = vunpack.c.l.b16 %v195
    %v621 = vunpack.c.l.b16 %v196
    %v622 = vunpack.c.l.b16 %v197
    %v623 = vunpack.c.l.b16 %v198
    %v624 = vunpack.c.l.b16 %v199
    %v625 = vunpack.c.l.b16 %v200
    %v626 = vunpack.c.l.b16 %v201
    %v627 = vunpack.c.l.b16 %v202
    %v628 = vunpack.c.l.b16 %v203
    %v629 = vunpack.c.l.b16 %v204
    %v630 = vunpack.c.l.b16 %v205
    %v631 = vunpack.c.l.b16 %v206
    %v632 = vunpack.c.l.b16 %v207
    %v633 = vunpack.c.l.b16 %v208
    %v634 = vunpack.c.l.b16 %v209
    %v635 = vunpack.c.l.b16 %v210
    %v636 = vunpack.c.l.b16 %v211
    %v637 = vunpack.c.l.b16 %v212
    %v638 = vunpack.c.l.b16 %v213
    %v639 = vunpack.c.l.b16 %v214
    %v640 = vunpack.c.l.b16 %v215
    %v641 = vunpack.c.l.b16 %v216
    %v642 = vunpack.c.l.b16 %v217
    %v643 = vunpack.c.l.b16 %v218
    %v644 = vunpack.c.l.b16 %v219
    %v645 = vunpack.c.l.b16 %v220
    %v646 = vunpack.c.l.b16 %v221
    %v647 = vunpack.c.l.b16 %v222
    %v648 = vunpack.c.l.b16 %v223
    %v649 = vunpack.c.l.b16 %v224
    %v650 = vunpack.c.l.b16 %v225
    %v651 = vunpack.c.l.b16 %v226
    %v652 = vunpack.c.l.b16 %v227
    %v653 = vunpack.c.l.b16 %v228
    %v654 = vunpack.c.l.b16 %v229
    %v655 = vunpack.c.l.b16 %v230
    %v656 = vunpack.c.l.b16 %v231
    %v657 = vunpack.c.l.b16 %v232
    %v658 = vpack.c.b16 %v463, %v462
    %v659 = vpack.c.b16 %v465, %v464
    %v660 = vpack.c.b16 %v467, %v466
    %v661 = vpack.c.b16 %v469, %v468
    %v662 = vpack.c.b16 %v471, %v470
    %v663 = vpack.c.b16 %v473, %v472
    %v664 = vpack.c.b16 %v475, %v474
    %v665 = vpack.c.b16 %v477, %v476
    %v666 = vpack.c.b16 %v479, %v478
    %v667 = vpack.c.b16 %v481, %v480
    %v668 = vpack.c.b16 %v483, %v482
    %v669 = vpack.c.b16 %v485, %v484
    %v670 = vpack.c.b16 %v487, %v486
    %v671 = vpack.c.b16 %v489, %v488
    %v672 = vpack.c.b16 %v491, %v490
    %v673 = vpack.c.b16 %v493, %v492
    %v674 = vpack.c.b16 %v495, %v494
    %v675 = vpack.c.b16 %v497, %v496
    %v676 = vpack.c.b16 %v499, %v498
    %v677 = vpack.c.b16 %v501, %v500
    %v678 = vpack.c.b16 %v503, %v502
    %v679 = vpack.c.b16 %v505, %v504
    %v680 = vpack.c.b16 %v507, %v506
    %v681 = vpack.c.b16 %v509, %v508
    %v682 = vpack.c.b16 %v511, %v510
    %v683 = vpack.c.b16 %v513, %v512
    %v684 = vpack.c.b16 %v515, %v514
    %v685 = vpack.c.b16 %v517, %v516
    %v686 = vpack.c.b16 %v519, %v518
    %v687 = vpack.c.b16 %v521, %v520
    %v688 = vpack.c.b16 %v523, %v522
    %v689 = vpack.c.b16 %v525, %v524
    %v690 = vpack.c.b16 %v527, %v526
    %v691 = vpack.c.b16 %v529, %v528
    %v692 = vpack.c.b16 %v531, %v530
    %v693 = vpack.c.b16 %v533, %v532
    %v694 = vpack.c.b16 %v535, %v534
    %v695 = vpack.c.b16 %v537, %v536
    %v696 = vpack.c.b16 %v539, %v538
    %v697 = vpack.c.b16 %v541, %v540
    %v698 = vpack.c.b16 %v543, %v542
    %v699 = vpack.c.b16 %v545, %v544
    %v700 = vpack.c.b16 %v547, %v546
    %v701 = vpack.c.b16 %v549, %v548
    %v702 = vpack.c.b16 %v551, %v550
    %v703 = vpack.c.b16 %v553, %v552
    %v704 = vpack.c.b16 %v555, %v554
    %v705 = vpack.c.b16 %v557, %v556
    %v706 = vpack.c.b16 %v559, %v558
    %v707 = vpack.c.b16 %v561, %v560
    %v708 = vpack.c.b16 %v563, %v562
    %v709 = vpack.c.b16 %v565, %v564
    %v710 = vpack.c.b16 %v567, %v566
    %v711 = vpack.c.b16 %v569, %v568
    %v712 = vpack.c.b16 %v571, %v570
    %v713 = vpack.c.b16 %v573, %v572
    %v714 = vpack.c.b16 %v575, %v574
    %v715 = vpack.c.b16 %v577, %v576
    %v716 = vpack.c.b16 %v579, %v578
    %v717 = vpack.c.b16 %v581, %v580
    %v718 = vpack.c.b16 %v583, %v582
    %v719 = vpack.c.b16 %v585, %v584
    %v720 = vpack.c.b16 %v587, %v586
    %v721 = vpack.c.b16 %v589, %v588
    %v722 = vpack.c.b16 %v591, %v590
    %v723 = vpack.c.b16 %v593, %v592
    %v724 = vpack.c.b16 %v595, %v594
    %v725 = vpack.c.b16 %v597, %v596
    %v726 = vpack.c.b16 %v599, %v598
    %v727 = vpack.c.b16 %v601, %v600
    %v728 = vpack.c.b16 %v603, %v602
    %v729 = vpack.c.b16 %v605, %v604
    %v730 = vpack.c.b16 %v607, %v606
    %v731 = vpack.c.b16 %v609, %v608
    %v732 = vpack.c.b16 %v611, %v610
    %v733 = vpack.c.b16 %v613, %v612
    %v734 = vpack.c.b16 %v615, %v614
    %v735 = vpack.c.b16 %v617, %v616
    %v736 = vpack.c.b16 %v619, %v618
    %v737 = vpack.c.b16 %v621, %v620
    %v738 = vpack.c.b16 %v623, %v622
    %v739 = vpack.c.b16 %v625, %v624
    %v740 = vpack.c.b16 %v627, %v626
    %v741 = vpack.c.b16 %v629, %v628
    %v742 = vpack.c.b16 %v631, %v630
    %v743 = vpack.c.b16 %v633, %v632
    %v744 = vpack.c.b16 %v635, %v634
    %v745 = vpack.c.b16 %v637, %v636
    %v746 = vpack.c.b16 %v639, %v638
    %v747 = vpack.c.b16 %v641, %v640
    %v748 = vpack.c.b16 %v643, %v642
    %v749 = vpack.c.b16 %v645, %v644
    %v750 = vpack.c.b16 %v647, %v646
    %v751 = vpack.c.b16 %v649, %v648
    %v752 = vpack.c.b16 %v651, %v650
    %v753 = vpack.c.b16 %v653, %v652
    %v754 = vpack.c.b16 %v655, %v654
    %v755 = vpack.c.b16 %v657, %v656
    %vm854 = vcmask 261120
    %v855 = vsel %vm854, %v253, 0
    %857 = vmatpush.bf16.msra.mxu0 %v665
    %858 = vmatpush.bf16.msra.mxu0 %v664
    %859 = vmatpush.bf16.msra.mxu0 %v663
    %860 = vmatpush.bf16.msra.mxu0 %v662
    %861 = vmatpush.bf16.msra.mxu0 %v661
    %862 = vmatpush.bf16.msra.mxu0 %v660
    %863 = vmatpush.bf16.msra.mxu0 %v659
    %864 = vmatpush.bf16.msra.mxu0 %v658
    %865 = vmatmul.bf16.gmra.mxu0 %v239
    %v866 = vpop.f32.mrf.mxu0
    %v867 = vadd.f32 %v235, %v866
    %v868 = vpop.f32.mrf.mxu0
    %869 = vdwg.mxu0
    %870 = vmatpush.bf16.msra.mxu0 %v673
    %871 = vmatpush.bf16.msra.mxu0 %v672
    %872 = vmatpush.bf16.msra.mxu0 %v671
    %873 = vmatpush.bf16.msra.mxu0 %v670
    %874 = vmatpush.bf16.msra.mxu0 %v669
    %875 = vmatpush.bf16.msra.mxu0 %v668
    %876 = vmatpush.bf16.msra.mxu0 %v667
    %877 = vmatpush.bf16.msra.mxu0 %v666
    %878 = vmatmul.bf16.gmra.mxu0 %v240
    %v879 = vpop.f32.mrf.mxu0
    %v880 = vadd.f32 %v867, %v879
    %v881 = vpop.f32.mrf.mxu0
    %882 = vdwg.mxu0
    %883 = vmatpush.bf16.msra.mxu0 %v681
    %884 = vmatpush.bf16.msra.mxu0 %v680
    %885 = vmatpush.bf16.msra.mxu0 %v679
    %886 = vmatpush.bf16.msra.mxu0 %v678
    %887 = vmatpush.bf16.msra.mxu0 %v677
    %888 = vmatpush.bf16.msra.mxu0 %v676
    %889 = vmatpush.bf16.msra.mxu0 %v675
    %890 = vmatpush.bf16.msra.mxu0 %v674
    %891 = vmatmul.bf16.gmra.mxu0 %v241
    %v892 = vpop.f32.mrf.mxu0
    %v893 = vadd.f32 %v880, %v892
    %v894 = vpop.f32.mrf.mxu0
    %895 = vdwg.mxu0
    %896 = vmatpush.bf16.msra.mxu0 %v689
    %897 = vmatpush.bf16.msra.mxu0 %v688
    %898 = vmatpush.bf16.msra.mxu0 %v687
    %899 = vmatpush.bf16.msra.mxu0 %v686
    %900 = vmatpush.bf16.msra.mxu0 %v685
    %901 = vmatpush.bf16.msra.mxu0 %v684
    %902 = vmatpush.bf16.msra.mxu0 %v683
    %903 = vmatpush.bf16.msra.mxu0 %v682
    %904 = vmatmul.bf16.gmra.mxu0 %v242
    %v905 = vpop.f32.mrf.mxu0
    %v906 = vadd.f32 %v893, %v905
    %v907 = vpop.f32.mrf.mxu0
    %908 = vdwg.mxu0
    %909 = vmatpush.bf16.msra.mxu0 %v697
    %910 = vmatpush.bf16.msra.mxu0 %v696
    %911 = vmatpush.bf16.msra.mxu0 %v695
    %912 = vmatpush.bf16.msra.mxu0 %v694
    %913 = vmatpush.bf16.msra.mxu0 %v693
    %914 = vmatpush.bf16.msra.mxu0 %v692
    %915 = vmatpush.bf16.msra.mxu0 %v691
    %916 = vmatpush.bf16.msra.mxu0 %v690
    %917 = vmatmul.bf16.gmra.mxu0 %v243
    %v918 = vpop.f32.mrf.mxu0
    %v919 = vadd.f32 %v906, %v918
    %v920 = vpop.f32.mrf.mxu0
    %921 = vdwg.mxu0
    %922 = vmatpush.bf16.msra.mxu0 %v705
    %923 = vmatpush.bf16.msra.mxu0 %v704
    %924 = vmatpush.bf16.msra.mxu0 %v703
    %925 = vmatpush.bf16.msra.mxu0 %v702
    %926 = vmatpush.bf16.msra.mxu0 %v701
    %927 = vmatpush.bf16.msra.mxu0 %v700
    %928 = vmatpush.bf16.msra.mxu0 %v699
    %929 = vmatpush.bf16.msra.mxu0 %v698
    %930 = vmatmul.bf16.gmra.mxu0 %v244
    %v931 = vpop.f32.mrf.mxu0
    %v932 = vadd.f32 %v919, %v931
    %v933 = vpop.f32.mrf.mxu0
    %934 = vdwg.mxu0
    %935 = vmatpush.bf16.msra.mxu0 %v713
    %936 = vmatpush.bf16.msra.mxu0 %v712
    %937 = vmatpush.bf16.msra.mxu0 %v711
    %938 = vmatpush.bf16.msra.mxu0 %v710
    %939 = vmatpush.bf16.msra.mxu0 %v709
    %940 = vmatpush.bf16.msra.mxu0 %v708
    %941 = vmatpush.bf16.msra.mxu0 %v707
    %942 = vmatpush.bf16.msra.mxu0 %v706
    %943 = vmatmul.bf16.gmra.mxu0 %v245
    %v944 = vpop.f32.mrf.mxu0
    %v945 = vadd.f32 %v932, %v944
    %v946 = vpop.f32.mrf.mxu0
    %947 = vdwg.mxu0
    %948 = vmatpush.bf16.msra.mxu0 %v721
    %949 = vmatpush.bf16.msra.mxu0 %v720
    %950 = vmatpush.bf16.msra.mxu0 %v719
    %951 = vmatpush.bf16.msra.mxu0 %v718
    %952 = vmatpush.bf16.msra.mxu0 %v717
    %953 = vmatpush.bf16.msra.mxu0 %v716
    %954 = vmatpush.bf16.msra.mxu0 %v715
    %955 = vmatpush.bf16.msra.mxu0 %v714
    %956 = vmatmul.bf16.gmra.mxu0 %v246
    %v957 = vpop.f32.mrf.mxu0
    %v958 = vadd.f32 %v945, %v957
    %v959 = vpop.f32.mrf.mxu0
    %960 = vdwg.mxu0
    %961 = vmatpush.bf16.msra.mxu0 %v729
    %962 = vmatpush.bf16.msra.mxu0 %v728
    %963 = vmatpush.bf16.msra.mxu0 %v727
    %964 = vmatpush.bf16.msra.mxu0 %v726
    %965 = vmatpush.bf16.msra.mxu0 %v725
    %966 = vmatpush.bf16.msra.mxu0 %v724
    %967 = vmatpush.bf16.msra.mxu0 %v723
    %968 = vmatpush.bf16.msra.mxu0 %v722
    %969 = vmatmul.bf16.gmra.mxu0 %v249
    %v970 = vpop.f32.mrf.mxu0
    %v971 = vadd.f32 %v958, %v970
    %v972 = vpop.f32.mrf.mxu0
    %973 = vdwg.mxu0
    %974 = vmatpush.bf16.msra.mxu0 %v737
    %975 = vmatpush.bf16.msra.mxu0 %v736
    %976 = vmatpush.bf16.msra.mxu0 %v735
    %977 = vmatpush.bf16.msra.mxu0 %v734
    %978 = vmatpush.bf16.msra.mxu0 %v733
    %979 = vmatpush.bf16.msra.mxu0 %v732
    %980 = vmatpush.bf16.msra.mxu0 %v731
    %981 = vmatpush.bf16.msra.mxu0 %v730
    %982 = vmatmul.bf16.gmra.mxu0 %v250
    %v983 = vpop.f32.mrf.mxu0
    %v984 = vadd.f32 %v971, %v983
    %v985 = vpop.f32.mrf.mxu0
    %986 = vdwg.mxu0
    %987 = vmatpush.bf16.msra.mxu0 %v745
    %988 = vmatpush.bf16.msra.mxu0 %v744
    %989 = vmatpush.bf16.msra.mxu0 %v743
    %990 = vmatpush.bf16.msra.mxu0 %v742
    %991 = vmatpush.bf16.msra.mxu0 %v741
    %992 = vmatpush.bf16.msra.mxu0 %v740
    %993 = vmatpush.bf16.msra.mxu0 %v739
    %994 = vmatpush.bf16.msra.mxu0 %v738
    %995 = vmatmul.bf16.gmra.mxu0 %v251
    %v996 = vpop.f32.mrf.mxu0
    %v997 = vadd.f32 %v984, %v996
    %v998 = vpop.f32.mrf.mxu0
    %999 = vdwg.mxu0
    %1000 = vmatpush.bf16.msra.mxu0 %v753
    %1001 = vmatpush.bf16.msra.mxu0 %v752
    %1002 = vmatpush.bf16.msra.mxu0 %v751
    %1003 = vmatpush.bf16.msra.mxu0 %v750
    %1004 = vmatpush.bf16.msra.mxu0 %v749
    %1005 = vmatpush.bf16.msra.mxu0 %v748
    %1006 = vmatpush.bf16.msra.mxu0 %v747
    %1007 = vmatpush.bf16.msra.mxu0 %v746
    %1008 = vmatmul.bf16.gmra.mxu0 %v252
    %v1009 = vpop.f32.mrf.mxu0
    %v1010 = vadd.f32 %v997, %v1009
    %v1011 = vpop.f32.mrf.mxu0
    %1012 = vdwg.mxu0
    %1013 = vmatpush.bf16.msra.mxu0 0
    %1014 = vmatpush.bf16.msra.mxu0 0
    %1015 = vmatpush.bf16.msra.mxu0 0
    %1016 = vmatpush.bf16.msra.mxu0 0
    %1017 = vmatpush.bf16.msra.mxu0 0
    %1018 = vmatpush.bf16.msra.mxu0 0
    %1019 = vmatpush.bf16.msra.mxu0 %v755
    %1020 = vmatpush.bf16.msra.mxu0 %v754
    %1021 = vmatmul.bf16.gmra.mxu0 %v855
    %v1022 = vpop.f32.mrf.mxu0
    %v1023 = vadd.f32 %v1010, %v1022
    %v1024 = vpop.f32.mrf.mxu0
    %1025 = vdwg.mxu0
    %v1026 = vmax.f32 %v1023, 0.0
    %v1027 = vld [vmem:[%s3] sm:$0xff]
    %v1028 = vld [vmem:[%s3 + $0x8] sm:$0xff]
    %v1029 = vld [vmem:[%s3 + $0x10] sm:$0xff]
    %v1030 = vld [vmem:[%s3 + $0x18] sm:$0xff]
    %v1031 = vld [vmem:[%s3 + $0x20] sm:$0xff]
    %v1032 = vld [vmem:[%s3 + $0x28] sm:$0xff]
    %v1033 = vld [vmem:[%s3 + $0x30] sm:$0xff]
    %v1034 = vld [vmem:[%s3 + $0x38] sm:$0xff]
    %v1035 = vld [vmem:[%s3 + $0x40] sm:$0xff]
    %v1036 = vld [vmem:[%s3 + $0x48] sm:$0xff]
    %v1037 = vld [vmem:[%s3 + $0x50] sm:$0xff]
    %v1038 = vld [vmem:[%s3 + $0x58] sm:$0xff]
    %v1039 = vld [vmem:[%s3 + $0x60] sm:$0xff]
    %v1040 = vld [vmem:[%s3 + $0x68] sm:$0xff]
    %v1041 = vld [vmem:[%s3 + $0x70] sm:$0xff]
    %v1042 = vld [vmem:[%s3 + $0x78] sm:$0xff]
    %v1043 = vld [vmem:[%s4] sm:$0x1]
    %v1045 = vperm.slane %v1043, 0
    %1047 = vmatpush.msra.mxu0 %v1042
    %1048 = vmatpush.msra.mxu0 %v1041
    %1049 = vmatpush.msra.mxu0 %v1040
    %1050 = vmatpush.msra.mxu0 %v1039
    %1051 = vmatpush.msra.mxu0 %v1038
    %1052 = vmatpush.msra.mxu0 %v1037
    %1053 = vmatpush.msra.mxu0 %v1036
    %1054 = vmatpush.msra.mxu0 %v1035
    %1055 = vmatpush.msra.mxu0 %v1034
    %1056 = vmatpush.msra.mxu0 %v1033
    %1057 = vmatpush.msra.mxu0 %v1032
    %1058 = vmatpush.msra.mxu0 %v1031
    %1059 = vmatpush.msra.mxu0 %v1030
    %1060 = vmatpush.msra.mxu0 %v1029
    %1061 = vmatpush.msra.mxu0 %v1028
    %1062 = vmatpush.msra.mxu0 %v1027
    %1063 = vmatmul.f32.gmra.mxu0 %v1026
    %v1064 = vpop.f32.mrf.mxu0
    %v1065 = vadd.f32 %v1045, %v1064
    %1066 = vdwg.mxu0
    %v1067 = vld [vmem:[%s7] sm:$0x3]
    %v1068 = vmul.f32 %v1065, 0.5
    %v1069 = vmul.f32 %v1068, 1.442695
    %v1070 = vpow.pop %v1069
    %1072 = vrot.lane.b32.xlu0 %v1070, 112
    %v1073 = vpop.permute.xlu0 %1072
    %v1075 = vmul.f32 %v1067, %v1073
    %v1076 = vadd.f32 %v1065, %v1075
    %v1077 = vld [vmem:[%s5] sm:$0xff]
    %v1078 = vld [vmem:[%s5 + $0x8] sm:$0xff]
    %v1079 = vld [vmem:[%s5 + $0x10] sm:$0xff]
    %v1080 = vld [vmem:[%s5 + $0x18] sm:$0xff]
    %v1081 = vld [vmem:[%s5 + $0x20] sm:$0xff]
    %v1082 = vld [vmem:[%s5 + $0x28] sm:$0xff]
    %v1083 = vld [vmem:[%s5 + $0x30] sm:$0xff]
    %v1084 = vld [vmem:[%s5 + $0x38] sm:$0xff]
    %v1085 = vld [vmem:[%s5 + $0x40] sm:$0xff]
    %v1086 = vld [vmem:[%s5 + $0x48] sm:$0xff]
    %v1087 = vld [vmem:[%s5 + $0x50] sm:$0xff]
    %v1088 = vld [vmem:[%s5 + $0x58] sm:$0xff]
    %v1089 = vld [vmem:[%s5 + $0x60] sm:$0xff]
    %v1090 = vld [vmem:[%s5 + $0x68] sm:$0xff]
    %v1091 = vld [vmem:[%s6] sm:$0x7f]
    %v1093 = vperm.slane %v1091, 0
    %v1094 = vperm.slane %v1091, 1
    %v1095 = vperm.slane %v1091, 2
    %v1096 = vperm.slane %v1091, 3
    %v1097 = vperm.slane %v1091, 4
    %v1098 = vperm.slane %v1091, 5
    %v1099 = vperm.slane %v1091, 6
    %vm1107 = vcmask 130048
    %v1109 = vsel %vm1107, %v1076, 0
    %1111 = vmatpush.msra.mxu0 0.0
    %1112 = vmatpush.msra.mxu0 0.0
    %1113 = vmatpush.msra.mxu0 0.0
    %1114 = vmatpush.msra.mxu0 0.0
    %1115 = vmatpush.msra.mxu0 0.0
    %1116 = vmatpush.msra.mxu0 0.0
    %1117 = vmatpush.msra.mxu0 0.0
    %1118 = vmatpush.msra.mxu0 0.0
    %1119 = vmatpush.msra.mxu0 0.0
    %1120 = vmatpush.msra.mxu0 0.0
    %1121 = vmatpush.msra.mxu0 0.0
    %1122 = vmatpush.msra.mxu0 0.0
    %1123 = vmatpush.msra.mxu0 0.0
    %1124 = vmatpush.msra.mxu0 0.0
    %1125 = vmatpush.msra.mxu0 %v1084
    %1126 = vmatpush.msra.mxu0 %v1077
    %1127 = vmatmul.f32.gmra.mxu0 %v1109
    %v1128 = vpop.f32.mrf.mxu0
    %v1129 = vadd.f32 %v1093, %v1128
    %1130 = vdwg.mxu0
    %1131 = vmatpush.msra.mxu0 0.0
    %1132 = vmatpush.msra.mxu0 0.0
    %1133 = vmatpush.msra.mxu0 0.0
    %1134 = vmatpush.msra.mxu0 0.0
    %1135 = vmatpush.msra.mxu0 0.0
    %1136 = vmatpush.msra.mxu0 0.0
    %1137 = vmatpush.msra.mxu0 0.0
    %1138 = vmatpush.msra.mxu0 0.0
    %1139 = vmatpush.msra.mxu0 0.0
    %1140 = vmatpush.msra.mxu0 0.0
    %1141 = vmatpush.msra.mxu0 0.0
    %1142 = vmatpush.msra.mxu0 0.0
    %1143 = vmatpush.msra.mxu0 0.0
    %1144 = vmatpush.msra.mxu0 0.0
    %1145 = vmatpush.msra.mxu0 %v1085
    %1146 = vmatpush.msra.mxu0 %v1078
    %1147 = vmatmul.f32.gmra.mxu0 %v1109
    %v1148 = vpop.f32.mrf.mxu0
    %v1149 = vadd.f32 %v1094, %v1148
    %1150 = vdwg.mxu0
    %1151 = vmatpush.msra.mxu0 0.0
    %1152 = vmatpush.msra.mxu0 0.0
    %1153 = vmatpush.msra.mxu0 0.0
    %1154 = vmatpush.msra.mxu0 0.0
    %1155 = vmatpush.msra.mxu0 0.0
    %1156 = vmatpush.msra.mxu0 0.0
    %1157 = vmatpush.msra.mxu0 0.0
    %1158 = vmatpush.msra.mxu0 0.0
    %1159 = vmatpush.msra.mxu0 0.0
    %1160 = vmatpush.msra.mxu0 0.0
    %1161 = vmatpush.msra.mxu0 0.0
    %1162 = vmatpush.msra.mxu0 0.0
    %1163 = vmatpush.msra.mxu0 0.0
    %1164 = vmatpush.msra.mxu0 0.0
    %1165 = vmatpush.msra.mxu0 %v1086
    %1166 = vmatpush.msra.mxu0 %v1079
    %1167 = vmatmul.f32.gmra.mxu0 %v1109
    %v1168 = vpop.f32.mrf.mxu0
    %v1169 = vadd.f32 %v1095, %v1168
    %1170 = vdwg.mxu0
    %1171 = vmatpush.msra.mxu0 0.0
    %1172 = vmatpush.msra.mxu0 0.0
    %1173 = vmatpush.msra.mxu0 0.0
    %1174 = vmatpush.msra.mxu0 0.0
    %1175 = vmatpush.msra.mxu0 0.0
    %1176 = vmatpush.msra.mxu0 0.0
    %1177 = vmatpush.msra.mxu0 0.0
    %1178 = vmatpush.msra.mxu0 0.0
    %1179 = vmatpush.msra.mxu0 0.0
    %1180 = vmatpush.msra.mxu0 0.0
    %1181 = vmatpush.msra.mxu0 0.0
    %1182 = vmatpush.msra.mxu0 0.0
    %1183 = vmatpush.msra.mxu0 0.0
    %1184 = vmatpush.msra.mxu0 0.0
    %1185 = vmatpush.msra.mxu0 %v1087
    %1186 = vmatpush.msra.mxu0 %v1080
    %1187 = vmatmul.f32.gmra.mxu0 %v1109
    %v1188 = vpop.f32.mrf.mxu0
    %v1189 = vadd.f32 %v1096, %v1188
    %1190 = vdwg.mxu0
    %1191 = vmatpush.msra.mxu0 0.0
    %1192 = vmatpush.msra.mxu0 0.0
    %1193 = vmatpush.msra.mxu0 0.0
    %1194 = vmatpush.msra.mxu0 0.0
    %1195 = vmatpush.msra.mxu0 0.0
    %1196 = vmatpush.msra.mxu0 0.0
    %1197 = vmatpush.msra.mxu0 0.0
    %1198 = vmatpush.msra.mxu0 0.0
    %1199 = vmatpush.msra.mxu0 0.0
    %1200 = vmatpush.msra.mxu0 0.0
    %1201 = vmatpush.msra.mxu0 0.0
    %1202 = vmatpush.msra.mxu0 0.0
    %1203 = vmatpush.msra.mxu0 0.0
    %1204 = vmatpush.msra.mxu0 0.0
    %1205 = vmatpush.msra.mxu0 %v1088
    %1206 = vmatpush.msra.mxu0 %v1081
    %1207 = vmatmul.f32.gmra.mxu0 %v1109
    %v1208 = vpop.f32.mrf.mxu0
    %v1209 = vadd.f32 %v1097, %v1208
    %1210 = vdwg.mxu0
    %1211 = vmatpush.msra.mxu0 0.0
    %1212 = vmatpush.msra.mxu0 0.0
    %1213 = vmatpush.msra.mxu0 0.0
    %1214 = vmatpush.msra.mxu0 0.0
    %1215 = vmatpush.msra.mxu0 0.0
    %1216 = vmatpush.msra.mxu0 0.0
    %1217 = vmatpush.msra.mxu0 0.0
    %1218 = vmatpush.msra.mxu0 0.0
    %1219 = vmatpush.msra.mxu0 0.0
    %1220 = vmatpush.msra.mxu0 0.0
    %1221 = vmatpush.msra.mxu0 0.0
    %1222 = vmatpush.msra.mxu0 0.0
    %1223 = vmatpush.msra.mxu0 0.0
    %1224 = vmatpush.msra.mxu0 0.0
    %1225 = vmatpush.msra.mxu0 %v1089
    %1226 = vmatpush.msra.mxu0 %v1082
    %1227 = vmatmul.f32.gmra.mxu0 %v1109
    %v1228 = vpop.f32.mrf.mxu0
    %v1229 = vadd.f32 %v1098, %v1228
    %1230 = vdwg.mxu0
    %1231 = vmatpush.msra.mxu0 0.0
    %1232 = vmatpush.msra.mxu0 0.0
    %1233 = vmatpush.msra.mxu0 0.0
    %1234 = vmatpush.msra.mxu0 0.0
    %1235 = vmatpush.msra.mxu0 0.0
    %1236 = vmatpush.msra.mxu0 0.0
    %1237 = vmatpush.msra.mxu0 0.0
    %1238 = vmatpush.msra.mxu0 0.0
    %1239 = vmatpush.msra.mxu0 0.0
    %1240 = vmatpush.msra.mxu0 0.0
    %1241 = vmatpush.msra.mxu0 0.0
    %1242 = vmatpush.msra.mxu0 0.0
    %1243 = vmatpush.msra.mxu0 0.0
    %1244 = vmatpush.msra.mxu0 0.0
    %1245 = vmatpush.msra.mxu0 %v1090
    %1246 = vmatpush.msra.mxu0 %v1083
    %1247 = vmatmul.f32.gmra.mxu0 %v1109
    %v1248 = vpop.f32.mrf.mxu0
    %v1249 = vadd.f32 %v1099, %v1248
    %1250 = vdwg.mxu0
    %v1251 = vxor.u32 %v1129, 2147483648
    %v1252 = vxor.u32 %v1149, 2147483648
    %v1253 = vxor.u32 %v1169, 2147483648
    %v1254 = vxor.u32 %v1189, 2147483648
    %v1255 = vxor.u32 %v1209, 2147483648
    %v1256 = vxor.u32 %v1229, 2147483648
    %v1257 = vxor.u32 %v1249, 2147483648
    %v1258 = vmul.f32 %v1251, 1.442695
    %v1259 = vpow.pop %v1258
    %v1260 = vmul.f32 %v1252, 1.442695
    %v1261 = vpow.pop %v1260
    %v1262 = vmul.f32 %v1253, 1.442695
    %v1263 = vpow.pop %v1262
    %v1264 = vmul.f32 %v1254, 1.442695
    %v1265 = vpow.pop %v1264
    %v1266 = vmul.f32 %v1255, 1.442695
    %v1267 = vpow.pop %v1266
    %v1268 = vmul.f32 %v1256, 1.442695
    %v1269 = vpow.pop %v1268
    %v1270 = vmul.f32 %v1257, 1.442695
    %v1271 = vpow.pop %v1270
    %v1272 = vadd.f32 %v1259, 1.0
    %v1273 = vadd.f32 %v1261, 1.0
    %v1274 = vadd.f32 %v1263, 1.0
    %v1275 = vadd.f32 %v1265, 1.0
    %v1276 = vadd.f32 %v1267, 1.0
    %v1277 = vadd.f32 %v1269, 1.0
    %v1278 = vadd.f32 %v1271, 1.0
    %v1279 = vrcp.pop %v1272
    %v1280 = vmul.f32 %v1272, %v1279
    %v1281 = vsub.f32 1.0, %v1280
    %v1282 = vmul.f32 %v1279, %v1281
    %v1283 = vadd.f32 %v1279, %v1282
    %vm1284 = vweird.f32 %v1272
    %vm1285 = vweird.f32 %v1279
    %vm1286 = vmor %vm1284, %vm1285
    %v1287 = vsel %vm1286, %v1279, %v1283
    %v1288 = vand.u32 2147483647, %v1272
    %vm1289 = vcmp.eq.f32.partialorder %v1288, 8.507059e+37
    %v1290 = vand.u32 %v1272, 2147483648
    %v1291 = vor.u32 1.1754944e-38, %v1290
    %v1292 = vsel %vm1289, %v1291, %v1287
    %v1293 = vmul.f32 1.0, %v1292
    %v1294 = vrcp.pop %v1273
    %v1295 = vmul.f32 %v1273, %v1294
    %v1296 = vsub.f32 1.0, %v1295
    %v1297 = vmul.f32 %v1294, %v1296
    %v1298 = vadd.f32 %v1294, %v1297
    %vm1299 = vweird.f32 %v1273
    %vm1300 = vweird.f32 %v1294
    %vm1301 = vmor %vm1299, %vm1300
    %v1302 = vsel %vm1301, %v1294, %v1298
    %v1303 = vand.u32 2147483647, %v1273
    %vm1304 = vcmp.eq.f32.partialorder %v1303, 8.507059e+37
    %v1305 = vand.u32 %v1273, 2147483648
    %v1306 = vor.u32 1.1754944e-38, %v1305
    %v1307 = vsel %vm1304, %v1306, %v1302
    %v1308 = vmul.f32 1.0, %v1307
    %v1309 = vrcp.pop %v1274
    %v1310 = vmul.f32 %v1274, %v1309
    %v1311 = vsub.f32 1.0, %v1310
    %v1312 = vmul.f32 %v1309, %v1311
    %v1313 = vadd.f32 %v1309, %v1312
    %vm1314 = vweird.f32 %v1274
    %vm1315 = vweird.f32 %v1309
    %vm1316 = vmor %vm1314, %vm1315
    %v1317 = vsel %vm1316, %v1309, %v1313
    %v1318 = vand.u32 2147483647, %v1274
    %vm1319 = vcmp.eq.f32.partialorder %v1318, 8.507059e+37
    %v1320 = vand.u32 %v1274, 2147483648
    %v1321 = vor.u32 1.1754944e-38, %v1320
    %v1322 = vsel %vm1319, %v1321, %v1317
    %v1323 = vmul.f32 1.0, %v1322
    %v1324 = vrcp.pop %v1275
    %v1325 = vmul.f32 %v1275, %v1324
    %v1326 = vsub.f32 1.0, %v1325
    %v1327 = vmul.f32 %v1324, %v1326
    %v1328 = vadd.f32 %v1324, %v1327
    %vm1329 = vweird.f32 %v1275
    %vm1330 = vweird.f32 %v1324
    %vm1331 = vmor %vm1329, %vm1330
    %v1332 = vsel %vm1331, %v1324, %v1328
    %v1333 = vand.u32 2147483647, %v1275
    %vm1334 = vcmp.eq.f32.partialorder %v1333, 8.507059e+37
    %v1335 = vand.u32 %v1275, 2147483648
    %v1336 = vor.u32 1.1754944e-38, %v1335
    %v1337 = vsel %vm1334, %v1336, %v1332
    %v1338 = vmul.f32 1.0, %v1337
    %v1339 = vrcp.pop %v1276
    %v1340 = vmul.f32 %v1276, %v1339
    %v1341 = vsub.f32 1.0, %v1340
    %v1342 = vmul.f32 %v1339, %v1341
    %v1343 = vadd.f32 %v1339, %v1342
    %vm1344 = vweird.f32 %v1276
    %vm1345 = vweird.f32 %v1339
    %vm1346 = vmor %vm1344, %vm1345
    %v1347 = vsel %vm1346, %v1339, %v1343
    %v1348 = vand.u32 2147483647, %v1276
    %vm1349 = vcmp.eq.f32.partialorder %v1348, 8.507059e+37
    %v1350 = vand.u32 %v1276, 2147483648
    %v1351 = vor.u32 1.1754944e-38, %v1350
    %v1352 = vsel %vm1349, %v1351, %v1347
    %v1353 = vmul.f32 1.0, %v1352
    %v1354 = vrcp.pop %v1277
    %v1355 = vmul.f32 %v1277, %v1354
    %v1356 = vsub.f32 1.0, %v1355
    %v1357 = vmul.f32 %v1354, %v1356
    %v1358 = vadd.f32 %v1354, %v1357
    %vm1359 = vweird.f32 %v1277
    %vm1360 = vweird.f32 %v1354
    %vm1361 = vmor %vm1359, %vm1360
    %v1362 = vsel %vm1361, %v1354, %v1358
    %v1363 = vand.u32 2147483647, %v1277
    %vm1364 = vcmp.eq.f32.partialorder %v1363, 8.507059e+37
    %v1365 = vand.u32 %v1277, 2147483648
    %v1366 = vor.u32 1.1754944e-38, %v1365
    %v1367 = vsel %vm1364, %v1366, %v1362
    %v1368 = vmul.f32 1.0, %v1367
    %v1369 = vrcp.pop %v1278
    %v1370 = vmul.f32 %v1278, %v1369
    %v1371 = vsub.f32 1.0, %v1370
    %v1372 = vmul.f32 %v1369, %v1371
    %v1373 = vadd.f32 %v1369, %v1372
    %vm1374 = vweird.f32 %v1278
    %vm1375 = vweird.f32 %v1369
    %vm1376 = vmor %vm1374, %vm1375
    %v1377 = vsel %vm1376, %v1369, %v1373
    %v1378 = vand.u32 2147483647, %v1278
    %vm1379 = vcmp.eq.f32.partialorder %v1378, 8.507059e+37
    %v1380 = vand.u32 %v1278, 2147483648
    %v1381 = vor.u32 1.1754944e-38, %v1380
    %v1382 = vsel %vm1379, %v1381, %v1377
    %v1383 = vmul.f32 1.0, %v1382
    %v1391 = vrot.slane %v1308, 6
    %v1392 = vrot.slane %v1323, 4
    %v1393 = vrot.slane %v1338, 2
    %v1394 = vrot.slane %v1368, 6
    %v1395 = vrot.slane %v1383, 4
    %vm1396 = vcmask 1041408
    %v1397 = vsel %vm1396, %v1293, %v1391
    %vm1398 = vcmask 1045508
    %v1399 = vsel %vm1398, %v1392, %v1393
    %vm1400 = vcmask 1043456
    %v1401 = vsel %vm1400, %v1397, %v1399
    %v1402 = vsel %vm1396, %v1353, %v1394
    %v1403 = vsel %vm1400, %v1402, %v1395
    %1406 = vst [vmem:[%s8] sm:$0xff] %v1401
    %vm1407 = vcmask 1043458
    %vm1408 = vmor %vm1407, %vm1396
    %vm1409 = vcmask 128004
    %vm1410 = vmor %vm1409, %vm1408
    %1411 = vst.msk [vmem:[%s8 + $0x8] sm:$0x3f] %vm1410, %v1403
    %vm1412 = vcmask 123904
    %1413 = vst.msk [vmem:[#allocation2] sm:$0x3] %vm1412, %v1065
    %1415 = vrot.lane.b32.xlu0 %v1065, 112
    %v1416 = vpop.permute.xlu0 %1415
    %1418 = vst.msk [vmem:[#allocation4] sm:$0x3] %vm1412, %v1416
    // Predicated region
    $region34: #{mnist_vae_forward.5} parent=1 // pred_check
      _
    $region35: #{mnist_vae_forward.5} parent=1 // pred_check_branch
      %1420 = sbr.rel (0) target = $region37
    $region36: #{mnist_vae_forward.5} parent=1 // pred_region
      _
    $region37: #{mnist_vae_forward.5} parent=1 // pred_fallthru
      _
    // Predicated region
    $region38: #{mnist_vae_forward.5} parent=1 // pred_check
      _
    $region39: #{mnist_vae_forward.5} parent=1 // pred_check_branch
      %1422 = sbr.rel (0) target = $region41
    $region40: #{mnist_vae_forward.5} parent=1 // pred_region
      %1424 = vsyncadd [#allocation3], 0
      %s1426 = sshll.u32 [#allocation2], 4
      %s1427 = int_to_ptr.vmem [resolvable:$true] %s1426
      %s1428 = sshll.u32 %s9, 4
      %s1429 = int_to_ptr.hbm [resolvable:$true] %s1428
      %1431 = dma.vmem_to_hbm [thread:$0]  %s1427, 32, %s1429, [#allocation3]
    $region41: #{mnist_vae_forward.5} parent=1 // pred_fallthru
      _
    // Predicated region
    $region42: #{mnist_vae_forward.5} parent=1 // pred_check
      _
    $region43: #{mnist_vae_forward.5} parent=1 // pred_check_branch
      %1433 = sbr.rel (0) target = $region45
    $region44: #{mnist_vae_forward.5} parent=1 // pred_region
      %1435 = vsyncadd [#allocation5], 0
      %s1437 = sshll.u32 [#allocation4], 4
      %s1438 = int_to_ptr.vmem [resolvable:$true] %s1437
      %s1439 = sshll.u32 %s10, 4
      %s1440 = int_to_ptr.hbm [resolvable:$true] %s1439
      %1442 = dma.vmem_to_hbm [thread:$0]  %s1438, 32, %s1440, [#allocation5]
    $region45: #{mnist_vae_forward.5} parent=1 // pred_fallthru
      _
    // Predicated region
    $region46: #{mnist_vae_forward.5} parent=1 // pred_check
      _
    $region47: #{mnist_vae_forward.5} parent=1 // pred_check_branch
      %1444 = sbr.rel (0) target = $region49
    $region48: #{mnist_vae_forward.5} parent=1 // pred_region
      _
    $region49: #{mnist_vae_forward.5} parent=1 // pred_fallthru
      _
    // Predicated region
    $region50: #{mnist_vae_forward.5} parent=1 // pred_check
      _
    $region51: #{mnist_vae_forward.5} parent=1 // pred_check_branch
      %1446 = sbr.rel (0) target = $region53
    $region52: #{mnist_vae_forward.5} parent=1 // pred_region
      %1448 = dma.done [#allocation3], 32
    $region53: #{mnist_vae_forward.5} parent=1 // pred_fallthru
      _
    // Predicated region
    $region54: #{mnist_vae_forward.5} parent=1 // pred_check
      _
    $region55: #{mnist_vae_forward.5} parent=1 // pred_check_branch
      %1450 = sbr.rel (0) target = $region57
    $region56: #{mnist_vae_forward.5} parent=1 // pred_region
      %1452 = dma.done [#allocation5], 32
    $region57: #{mnist_vae_forward.5} parent=1 // pred_fallthru
      _
    %1453 = vsyncpa [#allocation3], 1
    %1454 = vsyncpa [#allocation5], 1

</llo_original>
